<compile_context>
chip_gen: v6e
topology: v6e:2x2x1
jax: 0.10.0
libtpu: 0.0.40
codegen_flags: <defaults>
</compile_context>

<pallas_src>
import jax
import jax.numpy as jnp
from jax.experimental import pallas as pl
from jax.experimental.pallas import tpu as pltpu


# ------------------------- banded conv weights (wrapper) ----------------------

def _band_weights(w_hwio, W):
    """(3,3,Ci,Co) conv weights -> (3, W*Ci, W*Co) block-banded matrices T[dy]:
         T[dy][ws*Ci+ci, w*Co+co] = w[dy, ws-w+1, ci, co]   (0 outside the band)
    so that row h of the conv output, flattened as (W*Co,), is
         out[h] = sum_dy  x[h+dy-1] @ T[dy]
    with x rows flattened as (W*Ci,).  Horizontal taps and 'same' padding are
    folded into T; only the vertical +/-1-row shifts remain for the kernel."""
    kh, kw, Ci, Co = w_hwio.shape
    ws = jnp.arange(W)[:, None]                       # source spatial column
    wd = jnp.arange(W)[None, :]                       # output spatial column
    dx = ws - wd + 1                                  # tap index, valid in [0, kw)
    valid = (dx >= 0) & (dx < kw)
    t = w_hwio[:, jnp.clip(dx, 0, kw - 1)]            # (kh, Wsrc, Wdst, Ci, Co)
    t = jnp.where(valid[None, :, :, None, None], t, 0.0)
    t = t.transpose(0, 1, 3, 2, 4).reshape(kh, W * Ci, W * Co)
    return t


# --------------------------------- the kernel ---------------------------------

def _make_kernel(N, H, W, Cmid, Cout, eps):
    f32 = jnp.float32
    inv_cnt = 1.0 / float(N * H * W)                  # BN reduces over (N, H, W)

    def shift_add(u0, u1, u2):
        # y[h] = u0[h-1] + u1[h] + u2[h+1], rows outside [0, H) are zero.
        row = jax.lax.broadcasted_iota(jnp.int32, u1.shape, 0)
        y = u1 + jnp.where(row == 0, 0.0, pltpu.roll(u0, shift=1, axis=0))
        y = y + jnp.where(row == H - 1, 0.0, pltpu.roll(u2, shift=H - 1, axis=0))
        return y

    def band_conv(a_bf16, t_ref):
        # a_bf16: (H, W*Ci) bf16; t_ref: (3, W*Ci, W*Co) bf16 -> (H, W*Co) f32.
        u = [jnp.dot(a_bf16, t_ref[dy], preferred_element_type=f32)
             for dy in range(3)]
        return shift_add(*u)

    def pool_lanes(v, C):
        # v: (1, W*C).  out[0, w*C+c] = sum_w' v[0, w'*C+c]  (pure XLU lane
        # rotations -> per-channel pooling without any cross-layout reshape).
        out = v
        for k in range(1, W):
            out = out + pltpu.roll(v, shift=k * C, axis=1)
        return out

    def kernel(x_ref, t1_ref, t2_ref, g1_ref, b1_ref, g2_ref, b2_ref, o_ref):
        # ---------------- stage 1: conv1 for every image (kept in vregs) ------
        y1 = [band_conv(x_ref[n].astype(jnp.bfloat16), t1_ref) for n in range(N)]

        s1 = jnp.zeros((1, W * Cmid), f32)
        for n in range(N):
            s1 = s1 + jnp.sum(y1[n], axis=0, keepdims=True)
        mean1 = pool_lanes(s1, Cmid) * inv_cnt

        c1 = [y1[n] - mean1 for n in range(N)]                # centered (exact var)
        q1 = jnp.zeros((1, W * Cmid), f32)
        for n in range(N):
            q1 = q1 + jnp.sum(c1[n] * c1[n], axis=0, keepdims=True)
        var1 = pool_lanes(q1, Cmid) * inv_cnt                 # biased, training-mode
        scale1 = g1_ref[...] * jax.lax.rsqrt(var1 + eps)

        # ------------- stage 2: BN1 + ReLU fused into conv2's operand ---------
        a1 = [jnp.maximum(c1[n] * scale1 + b1_ref[...], 0.0).astype(jnp.bfloat16)
              for n in range(N)]
        y2 = [band_conv(a1[n], t2_ref) for n in range(N)]

        s2 = jnp.zeros((1, W * Cout), f32)
        for n in range(N):
            s2 = s2 + jnp.sum(y2[n], axis=0, keepdims=True)
        mean2 = pool_lanes(s2, Cout) * inv_cnt

        c2 = [y2[n] - mean2 for n in range(N)]
        q2 = jnp.zeros((1, W * Cout), f32)
        for n in range(N):
            q2 = q2 + jnp.sum(c2[n] * c2[n], axis=0, keepdims=True)
        var2 = pool_lanes(q2, Cout) * inv_cnt
        scale2 = g2_ref[...] * jax.lax.rsqrt(var2 + eps)

        # ------------- BN2 + ReLU epilogue, lane-dense (W*Cout=128) store -----
        for n in range(N):
            o_ref[n] = jnp.maximum(c2[n] * scale2 + b2_ref[...],
                                   0.0).astype(o_ref.dtype)

    return kernel


# --------------------------------- DoubleConv ---------------------------------

def double_conv(x_nchw, params, eps=1e-5):
    """DoubleConv forward.  Input/output NCHW, like the PyTorch module."""
    N, Cin, H, W = x_nchw.shape
    Cmid = params["w1"].shape[-1]
    Cout = params["w2"].shape[-1]

    # NCHW -> (N, H, W*Cin) channel-minor rows (the only layout pass outside the
    # kernel).  TODO(synk): fold this into the kernel's read / write.
    x2d = jnp.transpose(x_nchw, (0, 2, 3, 1)).reshape(N, H, W * Cin)

    # Banded weights + tiled BN affine params (tiny, built once per call).
    t1 = _band_weights(params["w1"].astype(jnp.float32), W).astype(jnp.bfloat16)
    t2 = _band_weights(params["w2"].astype(jnp.float32), W).astype(jnp.bfloat16)
    g1 = jnp.tile(params["g1"].astype(jnp.float32), W)[None, :]
    b1 = jnp.tile(params["be1"].astype(jnp.float32), W)[None, :]
    g2 = jnp.tile(params["g2"].astype(jnp.float32), W)[None, :]
    b2 = jnp.tile(params["be2"].astype(jnp.float32), W)[None, :]

    out = pl.pallas_call(
        _make_kernel(N, H, W, Cmid, Cout, eps),
        out_shape=jax.ShapeDtypeStruct((N, H, W * Cout), jnp.float32),
        in_specs=[pl.BlockSpec(memory_space=pltpu.MemorySpace.VMEM)] * 7,
        out_specs=pl.BlockSpec(memory_space=pltpu.MemorySpace.VMEM),
        compiler_params=pltpu.CompilerParams(
            # Generous for the toy shapes (total operands + output < 1 MiB).
            vmem_limit_bytes=32 * 1024 * 1024),
    )(x2d, t1, t2, g1, b1, g2, b2)

    # (N, H, W*Cout) -> NCHW.  The reshape is free (same memory order); only the
    # final transpose is a real pass.
    return jnp.transpose(out.reshape(N, H, W, Cout), (0, 3, 1, 2))


# ----------------------- pure-JAX reference (correctness) ---------------------

def double_conv_reference(x_nchw, params, eps=1e-5):
    def stage(x_nhwc, w, g, b):
        y = jax.lax.conv_general_dilated(
            x_nhwc, w, (1, 1), "SAME",
            dimension_numbers=("NHWC", "HWIO", "NHWC"))
        m = jnp.mean(y, axis=(0, 1, 2))
        v = jnp.var(y, axis=(0, 1, 2))                  # biased (training-mode BN)
        return jnp.maximum((y - m) * (g / jnp.sqrt(v + eps)) + b, 0.0)

    x = jnp.transpose(x_nchw, (0, 2, 3, 1))
    z = stage(stage(x, params["w1"], params["g1"], params["be1"]),
              params["w2"], params["g2"], params["be2"])
    return jnp.transpose(z, (0, 3, 1, 2))


# --------------------------------- main ---------------------------------------

if __name__ == "__main__":
    key = jax.random.PRNGKey(0)
    ks = jax.random.split(key, 3)

    N, Cin, H, W = 2, 4, 16, 16
    Cmid = Cout = 8                                     # mid_channels defaults to out_channels

    x = jax.random.normal(ks[0], (N, Cin, H, W), jnp.float32)

    # Weights stored HWIO.  No conv biases: a per-channel constant before
    # training-mode BatchNorm cancels exactly in the forward pass.  BN params
    # match a freshly constructed PyTorch module (gamma=1, beta=0, eps=1e-5).
    params = {
        "w1": jax.random.normal(ks[1], (3, 3, Cin, Cmid), jnp.float32) * 0.1,
        "g1": jnp.ones((Cmid,), jnp.float32),
        "be1": jnp.zeros((Cmid,), jnp.float32),
        "w2": jax.random.normal(ks[2], (3, 3, Cmid, Cout), jnp.float32) * 0.1,
        "g2": jnp.ones((Cout,), jnp.float32),
        "be2": jnp.zeros((Cout,), jnp.float32),
    }

    out = jax.block_until_ready(double_conv(x, params))
    assert out.shape == (N, Cout, H, W), out.shape
    assert bool(jnp.all(out >= 0.0))                    # ReLU output is non-negative

    ref = jax.block_until_ready(double_conv_reference(x, params))
    # Tolerance sized for bf16 MXU operands (f32 accumulation / BN math).
    err = float(jnp.max(jnp.abs(out - ref)))
    assert bool(jnp.allclose(out, ref, atol=7.5e-2, rtol=7.5e-2)), err

    print("KERNEL_OK")
</pallas_src>

<mosaic_0001>
module attributes {stable_mosaic.version = 11 : i64} {
  func.func @kernel(%arg0: memref<2x16x64xf32, #tpu.memory_space<vmem>>, %arg1: memref<3x64x128xbf16, #tpu.memory_space<vmem>>, %arg2: memref<3x128x128xbf16, #tpu.memory_space<vmem>>, %arg3: memref<1x128xf32, #tpu.memory_space<vmem>>, %arg4: memref<1x128xf32, #tpu.memory_space<vmem>>, %arg5: memref<1x128xf32, #tpu.memory_space<vmem>>, %arg6: memref<1x128xf32, #tpu.memory_space<vmem>>, %arg7: memref<2x16x128xf32, #tpu.memory_space<vmem>>) attributes {dimension_semantics = [], scalar_prefetch = 0 : i64, scratch_operands = 0 : i64, tpu.core_type = #tpu.core_type<tc>} {
    %c0 = arith.constant 0 : index
    %c0_0 = arith.constant 0 : index
    %c0_1 = arith.constant 0 : index
    %0 = vector.load %arg0[%c0, %c0_0, %c0_1] : memref<2x16x64xf32, #tpu.memory_space<vmem>>, vector<1x16x64xf32>
    %1 = vector.shape_cast %0 : vector<1x16x64xf32> to vector<16x64xf32>
    %2 = arith.truncf %1 : vector<16x64xf32> to vector<16x64xbf16>
    %c0_2 = arith.constant 0 : index
    %c0_3 = arith.constant 0 : index
    %c0_4 = arith.constant 0 : index
    %3 = vector.load %arg1[%c0_2, %c0_3, %c0_4] : memref<3x64x128xbf16, #tpu.memory_space<vmem>>, vector<1x64x128xbf16>
    %4 = vector.shape_cast %3 : vector<1x64x128xbf16> to vector<64x128xbf16>
    %cst = arith.constant dense<0.000000e+00> : vector<16x128xf32>
    %5 = tpu.matmul %2, %4, %cst {dimension_numbers = #tpu.dot_dimension_numbers<[1], [0], [0], [1], [0, 0, 1, 1], [], []>} : vector<16x64xbf16>, vector<64x128xbf16>, vector<16x128xf32> -> vector<16x128xf32>
    %c1 = arith.constant 1 : index
    %c0_5 = arith.constant 0 : index
    %c0_6 = arith.constant 0 : index
    %6 = vector.load %arg1[%c1, %c0_5, %c0_6] : memref<3x64x128xbf16, #tpu.memory_space<vmem>>, vector<1x64x128xbf16>
    %7 = vector.shape_cast %6 : vector<1x64x128xbf16> to vector<64x128xbf16>
    %cst_7 = arith.constant dense<0.000000e+00> : vector<16x128xf32>
    %8 = tpu.matmul %2, %7, %cst_7 {dimension_numbers = #tpu.dot_dimension_numbers<[1], [0], [0], [1], [0, 0, 1, 1], [], []>} : vector<16x64xbf16>, vector<64x128xbf16>, vector<16x128xf32> -> vector<16x128xf32>
    %c2 = arith.constant 2 : index
    %c0_8 = arith.constant 0 : index
    %c0_9 = arith.constant 0 : index
    %9 = vector.load %arg1[%c2, %c0_8, %c0_9] : memref<3x64x128xbf16, #tpu.memory_space<vmem>>, vector<1x64x128xbf16>
    %10 = vector.shape_cast %9 : vector<1x64x128xbf16> to vector<64x128xbf16>
    %cst_10 = arith.constant dense<0.000000e+00> : vector<16x128xf32>
    %11 = tpu.matmul %2, %10, %cst_10 {dimension_numbers = #tpu.dot_dimension_numbers<[1], [0], [0], [1], [0, 0, 1, 1], [], []>} : vector<16x64xbf16>, vector<64x128xbf16>, vector<16x128xf32> -> vector<16x128xf32>
    %12 = tpu.iota {dimensions = array<i32: 0>} : vector<16x128xi32>
    %c0_i32 = arith.constant 0 : i32
    %13 = vector.broadcast %c0_i32 : i32 to vector<16x128xi32>
    %14 = arith.cmpi eq, %12, %13 : vector<16x128xi32>
    %c1_i32 = arith.constant 1 : i32
    %15 = tpu.dynamic_rotate %5 by %c1_i32 dim 0 : vector<16x128xf32>, i32 -> vector<16x128xf32>
    %cst_11 = arith.constant 0.000000e+00 : f32
    %16 = vector.broadcast %cst_11 : f32 to vector<16x128xf32>
    %17 = arith.select %14, %16, %15 : vector<16x128xi1>, vector<16x128xf32>
    %18 = arith.addf %8, %17 : vector<16x128xf32>
    %c15_i32 = arith.constant 15 : i32
    %19 = vector.broadcast %c15_i32 : i32 to vector<16x128xi32>
    %20 = arith.cmpi eq, %12, %19 : vector<16x128xi32>
    %c15_i32_12 = arith.constant 15 : i32
    %21 = tpu.dynamic_rotate %11 by %c15_i32_12 dim 0 : vector<16x128xf32>, i32 -> vector<16x128xf32>
    %cst_13 = arith.constant 0.000000e+00 : f32
    %22 = vector.broadcast %cst_13 : f32 to vector<16x128xf32>
    %23 = arith.select %20, %22, %21 : vector<16x128xi1>, vector<16x128xf32>
    %24 = arith.addf %18, %23 : vector<16x128xf32>
    %c1_14 = arith.constant 1 : index
    %c0_15 = arith.constant 0 : index
    %c0_16 = arith.constant 0 : index
    %25 = vector.load %arg0[%c1_14, %c0_15, %c0_16] : memref<2x16x64xf32, #tpu.memory_space<vmem>>, vector<1x16x64xf32>
    %26 = vector.shape_cast %25 : vector<1x16x64xf32> to vector<16x64xf32>
    %27 = arith.truncf %26 : vector<16x64xf32> to vector<16x64xbf16>
    %c0_17 = arith.constant 0 : index
    %c0_18 = arith.constant 0 : index
    %c0_19 = arith.constant 0 : index
    %28 = vector.load %arg1[%c0_17, %c0_18, %c0_19] : memref<3x64x128xbf16, #tpu.memory_space<vmem>>, vector<1x64x128xbf16>
    %29 = vector.shape_cast %28 : vector<1x64x128xbf16> to vector<64x128xbf16>
    %cst_20 = arith.constant dense<0.000000e+00> : vector<16x128xf32>
    %30 = tpu.matmul %27, %29, %cst_20 {dimension_numbers = #tpu.dot_dimension_numbers<[1], [0], [0], [1], [0, 0, 1, 1], [], []>} : vector<16x64xbf16>, vector<64x128xbf16>, vector<16x128xf32> -> vector<16x128xf32>
    %c1_21 = arith.constant 1 : index
    %c0_22 = arith.constant 0 : index
    %c0_23 = arith.constant 0 : index
    %31 = vector.load %arg1[%c1_21, %c0_22, %c0_23] : memref<3x64x128xbf16, #tpu.memory_space<vmem>>, vector<1x64x128xbf16>
    %32 = vector.shape_cast %31 : vector<1x64x128xbf16> to vector<64x128xbf16>
    %cst_24 = arith.constant dense<0.000000e+00> : vector<16x128xf32>
    %33 = tpu.matmul %27, %32, %cst_24 {dimension_numbers = #tpu.dot_dimension_numbers<[1], [0], [0], [1], [0, 0, 1, 1], [], []>} : vector<16x64xbf16>, vector<64x128xbf16>, vector<16x128xf32> -> vector<16x128xf32>
    %c2_25 = arith.constant 2 : index
    %c0_26 = arith.constant 0 : index
    %c0_27 = arith.constant 0 : index
    %34 = vector.load %arg1[%c2_25, %c0_26, %c0_27] : memref<3x64x128xbf16, #tpu.memory_space<vmem>>, vector<1x64x128xbf16>
    %35 = vector.shape_cast %34 : vector<1x64x128xbf16> to vector<64x128xbf16>
    %cst_28 = arith.constant dense<0.000000e+00> : vector<16x128xf32>
    %36 = tpu.matmul %27, %35, %cst_28 {dimension_numbers = #tpu.dot_dimension_numbers<[1], [0], [0], [1], [0, 0, 1, 1], [], []>} : vector<16x64xbf16>, vector<64x128xbf16>, vector<16x128xf32> -> vector<16x128xf32>
    %37 = tpu.iota {dimensions = array<i32: 0>} : vector<16x128xi32>
    %c0_i32_29 = arith.constant 0 : i32
    %38 = vector.broadcast %c0_i32_29 : i32 to vector<16x128xi32>
    %39 = arith.cmpi eq, %37, %38 : vector<16x128xi32>
    %c1_i32_30 = arith.constant 1 : i32
    %40 = tpu.dynamic_rotate %30 by %c1_i32_30 dim 0 : vector<16x128xf32>, i32 -> vector<16x128xf32>
    %cst_31 = arith.constant 0.000000e+00 : f32
    %41 = vector.broadcast %cst_31 : f32 to vector<16x128xf32>
    %42 = arith.select %39, %41, %40 : vector<16x128xi1>, vector<16x128xf32>
    %43 = arith.addf %33, %42 : vector<16x128xf32>
    %c15_i32_32 = arith.constant 15 : i32
    %44 = vector.broadcast %c15_i32_32 : i32 to vector<16x128xi32>
    %45 = arith.cmpi eq, %37, %44 : vector<16x128xi32>
    %c15_i32_33 = arith.constant 15 : i32
    %46 = tpu.dynamic_rotate %36 by %c15_i32_33 dim 0 : vector<16x128xf32>, i32 -> vector<16x128xf32>
    %cst_34 = arith.constant 0.000000e+00 : f32
    %47 = vector.broadcast %cst_34 : f32 to vector<16x128xf32>
    %48 = arith.select %45, %47, %46 : vector<16x128xi1>, vector<16x128xf32>
    %49 = arith.addf %43, %48 : vector<16x128xf32>
    %cst_35 = arith.constant 0.000000e+00 : f32
    %50 = vector.broadcast %cst_35 : f32 to vector<1x128xf32>
    %cst_36 = arith.constant dense<0.000000e+00> : vector<128xf32>
    %51 = vector.multi_reduction <add>, %24, %cst_36 [0] : vector<16x128xf32> to vector<128xf32>
    %52 = vector.shape_cast %51 : vector<128xf32> to vector<1x128xf32>
    %53 = arith.addf %50, %52 : vector<1x128xf32>
    %cst_37 = arith.constant dense<0.000000e+00> : vector<128xf32>
    %54 = vector.multi_reduction <add>, %49, %cst_37 [0] : vector<16x128xf32> to vector<128xf32>
    %55 = vector.shape_cast %54 : vector<128xf32> to vector<1x128xf32>
    %56 = arith.addf %53, %55 : vector<1x128xf32>
    %c8_i32 = arith.constant 8 : i32
    %57 = tpu.dynamic_rotate %56 by %c8_i32 dim 1 : vector<1x128xf32>, i32 -> vector<1x128xf32>
    %58 = arith.addf %56, %57 : vector<1x128xf32>
    %c16_i32 = arith.constant 16 : i32
    %59 = tpu.dynamic_rotate %56 by %c16_i32 dim 1 : vector<1x128xf32>, i32 -> vector<1x128xf32>
    %60 = arith.addf %58, %59 : vector<1x128xf32>
    %c24_i32 = arith.constant 24 : i32
    %61 = tpu.dynamic_rotate %56 by %c24_i32 dim 1 : vector<1x128xf32>, i32 -> vector<1x128xf32>
    %62 = arith.addf %60, %61 : vector<1x128xf32>
    %c32_i32 = arith.constant 32 : i32
    %63 = tpu.dynamic_rotate %56 by %c32_i32 dim 1 : vector<1x128xf32>, i32 -> vector<1x128xf32>
    %64 = arith.addf %62, %63 : vector<1x128xf32>
    %c40_i32 = arith.constant 40 : i32
    %65 = tpu.dynamic_rotate %56 by %c40_i32 dim 1 : vector<1x128xf32>, i32 -> vector<1x128xf32>
    %66 = arith.addf %64, %65 : vector<1x128xf32>
    %c48_i32 = arith.constant 48 : i32
    %67 = tpu.dynamic_rotate %56 by %c48_i32 dim 1 : vector<1x128xf32>, i32 -> vector<1x128xf32>
    %68 = arith.addf %66, %67 : vector<1x128xf32>
    %c56_i32 = arith.constant 56 : i32
    %69 = tpu.dynamic_rotate %56 by %c56_i32 dim 1 : vector<1x128xf32>, i32 -> vector<1x128xf32>
    %70 = arith.addf %68, %69 : vector<1x128xf32>
    %c64_i32 = arith.constant 64 : i32
    %71 = tpu.dynamic_rotate %56 by %c64_i32 dim 1 : vector<1x128xf32>, i32 -> vector<1x128xf32>
    %72 = arith.addf %70, %71 : vector<1x128xf32>
    %c72_i32 = arith.constant 72 : i32
    %73 = tpu.dynamic_rotate %56 by %c72_i32 dim 1 : vector<1x128xf32>, i32 -> vector<1x128xf32>
    %74 = arith.addf %72, %73 : vector<1x128xf32>
    %c80_i32 = arith.constant 80 : i32
    %75 = tpu.dynamic_rotate %56 by %c80_i32 dim 1 : vector<1x128xf32>, i32 -> vector<1x128xf32>
    %76 = arith.addf %74, %75 : vector<1x128xf32>
    %c88_i32 = arith.constant 88 : i32
    %77 = tpu.dynamic_rotate %56 by %c88_i32 dim 1 : vector<1x128xf32>, i32 -> vector<1x128xf32>
    %78 = arith.addf %76, %77 : vector<1x128xf32>
    %c96_i32 = arith.constant 96 : i32
    %79 = tpu.dynamic_rotate %56 by %c96_i32 dim 1 : vector<1x128xf32>, i32 -> vector<1x128xf32>
    %80 = arith.addf %78, %79 : vector<1x128xf32>
    %c104_i32 = arith.constant 104 : i32
    %81 = tpu.dynamic_rotate %56 by %c104_i32 dim 1 : vector<1x128xf32>, i32 -> vector<1x128xf32>
    %82 = arith.addf %80, %81 : vector<1x128xf32>
    %c112_i32 = arith.constant 112 : i32
    %83 = tpu.dynamic_rotate %56 by %c112_i32 dim 1 : vector<1x128xf32>, i32 -> vector<1x128xf32>
    %84 = arith.addf %82, %83 : vector<1x128xf32>
    %c120_i32 = arith.constant 120 : i32
    %85 = tpu.dynamic_rotate %56 by %c120_i32 dim 1 : vector<1x128xf32>, i32 -> vector<1x128xf32>
    %86 = arith.addf %84, %85 : vector<1x128xf32>
    %cst_38 = arith.constant 0.001953125 : f32
    %87 = vector.broadcast %cst_38 : f32 to vector<1x128xf32>
    %88 = arith.mulf %86, %87 : vector<1x128xf32>
    %89 = vector.broadcast %88 : vector<1x128xf32> to vector<16x128xf32>
    %90 = arith.subf %24, %89 : vector<16x128xf32>
    %91 = vector.broadcast %88 : vector<1x128xf32> to vector<16x128xf32>
    %92 = arith.subf %49, %91 : vector<16x128xf32>
    %cst_39 = arith.constant 0.000000e+00 : f32
    %93 = vector.broadcast %cst_39 : f32 to vector<1x128xf32>
    %94 = arith.mulf %90, %90 : vector<16x128xf32>
    %cst_40 = arith.constant dense<0.000000e+00> : vector<128xf32>
    %95 = vector.multi_reduction <add>, %94, %cst_40 [0] : vector<16x128xf32> to vector<128xf32>
    %96 = vector.shape_cast %95 : vector<128xf32> to vector<1x128xf32>
    %97 = arith.addf %93, %96 : vector<1x128xf32>
    %98 = arith.mulf %92, %92 : vector<16x128xf32>
    %cst_41 = arith.constant dense<0.000000e+00> : vector<128xf32>
    %99 = vector.multi_reduction <add>, %98, %cst_41 [0] : vector<16x128xf32> to vector<128xf32>
    %100 = vector.shape_cast %99 : vector<128xf32> to vector<1x128xf32>
    %101 = arith.addf %97, %100 : vector<1x128xf32>
    %c8_i32_42 = arith.constant 8 : i32
    %102 = tpu.dynamic_rotate %101 by %c8_i32_42 dim 1 : vector<1x128xf32>, i32 -> vector<1x128xf32>
    %103 = arith.addf %101, %102 : vector<1x128xf32>
    %c16_i32_43 = arith.constant 16 : i32
    %104 = tpu.dynamic_rotate %101 by %c16_i32_43 dim 1 : vector<1x128xf32>, i32 -> vector<1x128xf32>
    %105 = arith.addf %103, %104 : vector<1x128xf32>
    %c24_i32_44 = arith.constant 24 : i32
    %106 = tpu.dynamic_rotate %101 by %c24_i32_44 dim 1 : vector<1x128xf32>, i32 -> vector<1x128xf32>
    %107 = arith.addf %105, %106 : vector<1x128xf32>
    %c32_i32_45 = arith.constant 32 : i32
    %108 = tpu.dynamic_rotate %101 by %c32_i32_45 dim 1 : vector<1x128xf32>, i32 -> vector<1x128xf32>
    %109 = arith.addf %107, %108 : vector<1x128xf32>
    %c40_i32_46 = arith.constant 40 : i32
    %110 = tpu.dynamic_rotate %101 by %c40_i32_46 dim 1 : vector<1x128xf32>, i32 -> vector<1x128xf32>
    %111 = arith.addf %109, %110 : vector<1x128xf32>
    %c48_i32_47 = arith.constant 48 : i32
    %112 = tpu.dynamic_rotate %101 by %c48_i32_47 dim 1 : vector<1x128xf32>, i32 -> vector<1x128xf32>
    %113 = arith.addf %111, %112 : vector<1x128xf32>
    %c56_i32_48 = arith.constant 56 : i32
    %114 = tpu.dynamic_rotate %101 by %c56_i32_48 dim 1 : vector<1x128xf32>, i32 -> vector<1x128xf32>
    %115 = arith.addf %113, %114 : vector<1x128xf32>
    %c64_i32_49 = arith.constant 64 : i32
    %116 = tpu.dynamic_rotate %101 by %c64_i32_49 dim 1 : vector<1x128xf32>, i32 -> vector<1x128xf32>
    %117 = arith.addf %115, %116 : vector<1x128xf32>
    %c72_i32_50 = arith.constant 72 : i32
    %118 = tpu.dynamic_rotate %101 by %c72_i32_50 dim 1 : vector<1x128xf32>, i32 -> vector<1x128xf32>
    %119 = arith.addf %117, %118 : vector<1x128xf32>
    %c80_i32_51 = arith.constant 80 : i32
    %120 = tpu.dynamic_rotate %101 by %c80_i32_51 dim 1 : vector<1x128xf32>, i32 -> vector<1x128xf32>
    %121 = arith.addf %119, %120 : vector<1x128xf32>
    %c88_i32_52 = arith.constant 88 : i32
    %122 = tpu.dynamic_rotate %101 by %c88_i32_52 dim 1 : vector<1x128xf32>, i32 -> vector<1x128xf32>
    %123 = arith.addf %121, %122 : vector<1x128xf32>
    %c96_i32_53 = arith.constant 96 : i32
    %124 = tpu.dynamic_rotate %101 by %c96_i32_53 dim 1 : vector<1x128xf32>, i32 -> vector<1x128xf32>
    %125 = arith.addf %123, %124 : vector<1x128xf32>
    %c104_i32_54 = arith.constant 104 : i32
    %126 = tpu.dynamic_rotate %101 by %c104_i32_54 dim 1 : vector<1x128xf32>, i32 -> vector<1x128xf32>
    %127 = arith.addf %125, %126 : vector<1x128xf32>
    %c112_i32_55 = arith.constant 112 : i32
    %128 = tpu.dynamic_rotate %101 by %c112_i32_55 dim 1 : vector<1x128xf32>, i32 -> vector<1x128xf32>
    %129 = arith.addf %127, %128 : vector<1x128xf32>
    %c120_i32_56 = arith.constant 120 : i32
    %130 = tpu.dynamic_rotate %101 by %c120_i32_56 dim 1 : vector<1x128xf32>, i32 -> vector<1x128xf32>
    %131 = arith.addf %129, %130 : vector<1x128xf32>
    %cst_57 = arith.constant 0.001953125 : f32
    %132 = vector.broadcast %cst_57 : f32 to vector<1x128xf32>
    %133 = arith.mulf %131, %132 : vector<1x128xf32>
    %c0_58 = arith.constant 0 : index
    %c0_59 = arith.constant 0 : index
    %134 = vector.load %arg3[%c0_58, %c0_59] : memref<1x128xf32, #tpu.memory_space<vmem>>, vector<1x128xf32>
    %cst_60 = arith.constant 9.99999974E-6 : f32
    %135 = vector.broadcast %cst_60 : f32 to vector<1x128xf32>
    %136 = arith.addf %133, %135 : vector<1x128xf32>
    %137 = math.rsqrt %136 : vector<1x128xf32>
    %138 = arith.mulf %134, %137 : vector<1x128xf32>
    %139 = vector.broadcast %138 : vector<1x128xf32> to vector<16x128xf32>
    %140 = arith.mulf %90, %139 : vector<16x128xf32>
    %c0_61 = arith.constant 0 : index
    %c0_62 = arith.constant 0 : index
    %141 = vector.load %arg4[%c0_61, %c0_62] : memref<1x128xf32, #tpu.memory_space<vmem>>, vector<1x128xf32>
    %142 = vector.broadcast %141 : vector<1x128xf32> to vector<16x128xf32>
    %143 = arith.addf %140, %142 : vector<16x128xf32>
    %cst_63 = arith.constant 0.000000e+00 : f32
    %144 = vector.broadcast %cst_63 : f32 to vector<16x128xf32>
    %145 = arith.maximumf %143, %144 : vector<16x128xf32>
    %146 = arith.truncf %145 : vector<16x128xf32> to vector<16x128xbf16>
    %147 = vector.broadcast %138 : vector<1x128xf32> to vector<16x128xf32>
    %148 = arith.mulf %92, %147 : vector<16x128xf32>
    %c0_64 = arith.constant 0 : index
    %c0_65 = arith.constant 0 : index
    %149 = vector.load %arg4[%c0_64, %c0_65] : memref<1x128xf32, #tpu.memory_space<vmem>>, vector<1x128xf32>
    %150 = vector.broadcast %149 : vector<1x128xf32> to vector<16x128xf32>
    %151 = arith.addf %148, %150 : vector<16x128xf32>
    %cst_66 = arith.constant 0.000000e+00 : f32
    %152 = vector.broadcast %cst_66 : f32 to vector<16x128xf32>
    %153 = arith.maximumf %151, %152 : vector<16x128xf32>
    %154 = arith.truncf %153 : vector<16x128xf32> to vector<16x128xbf16>
    %c0_67 = arith.constant 0 : index
    %c0_68 = arith.constant 0 : index
    %c0_69 = arith.constant 0 : index
    %155 = vector.load %arg2[%c0_67, %c0_68, %c0_69] : memref<3x128x128xbf16, #tpu.memory_space<vmem>>, vector<1x128x128xbf16>
    %156 = vector.shape_cast %155 : vector<1x128x128xbf16> to vector<128x128xbf16>
    %cst_70 = arith.constant dense<0.000000e+00> : vector<16x128xf32>
    %157 = tpu.matmul %146, %156, %cst_70 {dimension_numbers = #tpu.dot_dimension_numbers<[1], [0], [0], [1], [0, 0, 1, 1], [], []>} : vector<16x128xbf16>, vector<128x128xbf16>, vector<16x128xf32> -> vector<16x128xf32>
    %c1_71 = arith.constant 1 : index
    %c0_72 = arith.constant 0 : index
    %c0_73 = arith.constant 0 : index
    %158 = vector.load %arg2[%c1_71, %c0_72, %c0_73] : memref<3x128x128xbf16, #tpu.memory_space<vmem>>, vector<1x128x128xbf16>
    %159 = vector.shape_cast %158 : vector<1x128x128xbf16> to vector<128x128xbf16>
    %cst_74 = arith.constant dense<0.000000e+00> : vector<16x128xf32>
    %160 = tpu.matmul %146, %159, %cst_74 {dimension_numbers = #tpu.dot_dimension_numbers<[1], [0], [0], [1], [0, 0, 1, 1], [], []>} : vector<16x128xbf16>, vector<128x128xbf16>, vector<16x128xf32> -> vector<16x128xf32>
    %c2_75 = arith.constant 2 : index
    %c0_76 = arith.constant 0 : index
    %c0_77 = arith.constant 0 : index
    %161 = vector.load %arg2[%c2_75, %c0_76, %c0_77] : memref<3x128x128xbf16, #tpu.memory_space<vmem>>, vector<1x128x128xbf16>
    %162 = vector.shape_cast %161 : vector<1x128x128xbf16> to vector<128x128xbf16>
    %cst_78 = arith.constant dense<0.000000e+00> : vector<16x128xf32>
    %163 = tpu.matmul %146, %162, %cst_78 {dimension_numbers = #tpu.dot_dimension_numbers<[1], [0], [0], [1], [0, 0, 1, 1], [], []>} : vector<16x128xbf16>, vector<128x128xbf16>, vector<16x128xf32> -> vector<16x128xf32>
    %164 = tpu.iota {dimensions = array<i32: 0>} : vector<16x128xi32>
    %c0_i32_79 = arith.constant 0 : i32
    %165 = vector.broadcast %c0_i32_79 : i32 to vector<16x128xi32>
    %166 = arith.cmpi eq, %164, %165 : vector<16x128xi32>
    %c1_i32_80 = arith.constant 1 : i32
    %167 = tpu.dynamic_rotate %157 by %c1_i32_80 dim 0 : vector<16x128xf32>, i32 -> vector<16x128xf32>
    %cst_81 = arith.constant 0.000000e+00 : f32
    %168 = vector.broadcast %cst_81 : f32 to vector<16x128xf32>
    %169 = arith.select %166, %168, %167 : vector<16x128xi1>, vector<16x128xf32>
    %170 = arith.addf %160, %169 : vector<16x128xf32>
    %c15_i32_82 = arith.constant 15 : i32
    %171 = vector.broadcast %c15_i32_82 : i32 to vector<16x128xi32>
    %172 = arith.cmpi eq, %164, %171 : vector<16x128xi32>
    %c15_i32_83 = arith.constant 15 : i32
    %173 = tpu.dynamic_rotate %163 by %c15_i32_83 dim 0 : vector<16x128xf32>, i32 -> vector<16x128xf32>
    %cst_84 = arith.constant 0.000000e+00 : f32
    %174 = vector.broadcast %cst_84 : f32 to vector<16x128xf32>
    %175 = arith.select %172, %174, %173 : vector<16x128xi1>, vector<16x128xf32>
    %176 = arith.addf %170, %175 : vector<16x128xf32>
    %c0_85 = arith.constant 0 : index
    %c0_86 = arith.constant 0 : index
    %c0_87 = arith.constant 0 : index
    %177 = vector.load %arg2[%c0_85, %c0_86, %c0_87] : memref<3x128x128xbf16, #tpu.memory_space<vmem>>, vector<1x128x128xbf16>
    %178 = vector.shape_cast %177 : vector<1x128x128xbf16> to vector<128x128xbf16>
    %cst_88 = arith.constant dense<0.000000e+00> : vector<16x128xf32>
    %179 = tpu.matmul %154, %178, %cst_88 {dimension_numbers = #tpu.dot_dimension_numbers<[1], [0], [0], [1], [0, 0, 1, 1], [], []>} : vector<16x128xbf16>, vector<128x128xbf16>, vector<16x128xf32> -> vector<16x128xf32>
    %c1_89 = arith.constant 1 : index
    %c0_90 = arith.constant 0 : index
    %c0_91 = arith.constant 0 : index
    %180 = vector.load %arg2[%c1_89, %c0_90, %c0_91] : memref<3x128x128xbf16, #tpu.memory_space<vmem>>, vector<1x128x128xbf16>
    %181 = vector.shape_cast %180 : vector<1x128x128xbf16> to vector<128x128xbf16>
    %cst_92 = arith.constant dense<0.000000e+00> : vector<16x128xf32>
    %182 = tpu.matmul %154, %181, %cst_92 {dimension_numbers = #tpu.dot_dimension_numbers<[1], [0], [0], [1], [0, 0, 1, 1], [], []>} : vector<16x128xbf16>, vector<128x128xbf16>, vector<16x128xf32> -> vector<16x128xf32>
    %c2_93 = arith.constant 2 : index
    %c0_94 = arith.constant 0 : index
    %c0_95 = arith.constant 0 : index
    %183 = vector.load %arg2[%c2_93, %c0_94, %c0_95] : memref<3x128x128xbf16, #tpu.memory_space<vmem>>, vector<1x128x128xbf16>
    %184 = vector.shape_cast %183 : vector<1x128x128xbf16> to vector<128x128xbf16>
    %cst_96 = arith.constant dense<0.000000e+00> : vector<16x128xf32>
    %185 = tpu.matmul %154, %184, %cst_96 {dimension_numbers = #tpu.dot_dimension_numbers<[1], [0], [0], [1], [0, 0, 1, 1], [], []>} : vector<16x128xbf16>, vector<128x128xbf16>, vector<16x128xf32> -> vector<16x128xf32>
    %186 = tpu.iota {dimensions = array<i32: 0>} : vector<16x128xi32>
    %c0_i32_97 = arith.constant 0 : i32
    %187 = vector.broadcast %c0_i32_97 : i32 to vector<16x128xi32>
    %188 = arith.cmpi eq, %186, %187 : vector<16x128xi32>
    %c1_i32_98 = arith.constant 1 : i32
    %189 = tpu.dynamic_rotate %179 by %c1_i32_98 dim 0 : vector<16x128xf32>, i32 -> vector<16x128xf32>
    %cst_99 = arith.constant 0.000000e+00 : f32
    %190 = vector.broadcast %cst_99 : f32 to vector<16x128xf32>
    %191 = arith.select %188, %190, %189 : vector<16x128xi1>, vector<16x128xf32>
    %192 = arith.addf %182, %191 : vector<16x128xf32>
    %c15_i32_100 = arith.constant 15 : i32
    %193 = vector.broadcast %c15_i32_100 : i32 to vector<16x128xi32>
    %194 = arith.cmpi eq, %186, %193 : vector<16x128xi32>
    %c15_i32_101 = arith.constant 15 : i32
    %195 = tpu.dynamic_rotate %185 by %c15_i32_101 dim 0 : vector<16x128xf32>, i32 -> vector<16x128xf32>
    %cst_102 = arith.constant 0.000000e+00 : f32
    %196 = vector.broadcast %cst_102 : f32 to vector<16x128xf32>
    %197 = arith.select %194, %196, %195 : vector<16x128xi1>, vector<16x128xf32>
    %198 = arith.addf %192, %197 : vector<16x128xf32>
    %cst_103 = arith.constant 0.000000e+00 : f32
    %199 = vector.broadcast %cst_103 : f32 to vector<1x128xf32>
    %cst_104 = arith.constant dense<0.000000e+00> : vector<128xf32>
    %200 = vector.multi_reduction <add>, %176, %cst_104 [0] : vector<16x128xf32> to vector<128xf32>
    %201 = vector.shape_cast %200 : vector<128xf32> to vector<1x128xf32>
    %202 = arith.addf %199, %201 : vector<1x128xf32>
    %cst_105 = arith.constant dense<0.000000e+00> : vector<128xf32>
    %203 = vector.multi_reduction <add>, %198, %cst_105 [0] : vector<16x128xf32> to vector<128xf32>
    %204 = vector.shape_cast %203 : vector<128xf32> to vector<1x128xf32>
    %205 = arith.addf %202, %204 : vector<1x128xf32>
    %c8_i32_106 = arith.constant 8 : i32
    %206 = tpu.dynamic_rotate %205 by %c8_i32_106 dim 1 : vector<1x128xf32>, i32 -> vector<1x128xf32>
    %207 = arith.addf %205, %206 : vector<1x128xf32>
    %c16_i32_107 = arith.constant 16 : i32
    %208 = tpu.dynamic_rotate %205 by %c16_i32_107 dim 1 : vector<1x128xf32>, i32 -> vector<1x128xf32>
    %209 = arith.addf %207, %208 : vector<1x128xf32>
    %c24_i32_108 = arith.constant 24 : i32
    %210 = tpu.dynamic_rotate %205 by %c24_i32_108 dim 1 : vector<1x128xf32>, i32 -> vector<1x128xf32>
    %211 = arith.addf %209, %210 : vector<1x128xf32>
    %c32_i32_109 = arith.constant 32 : i32
    %212 = tpu.dynamic_rotate %205 by %c32_i32_109 dim 1 : vector<1x128xf32>, i32 -> vector<1x128xf32>
    %213 = arith.addf %211, %212 : vector<1x128xf32>
    %c40_i32_110 = arith.constant 40 : i32
    %214 = tpu.dynamic_rotate %205 by %c40_i32_110 dim 1 : vector<1x128xf32>, i32 -> vector<1x128xf32>
    %215 = arith.addf %213, %214 : vector<1x128xf32>
    %c48_i32_111 = arith.constant 48 : i32
    %216 = tpu.dynamic_rotate %205 by %c48_i32_111 dim 1 : vector<1x128xf32>, i32 -> vector<1x128xf32>
    %217 = arith.addf %215, %216 : vector<1x128xf32>
    %c56_i32_112 = arith.constant 56 : i32
    %218 = tpu.dynamic_rotate %205 by %c56_i32_112 dim 1 : vector<1x128xf32>, i32 -> vector<1x128xf32>
    %219 = arith.addf %217, %218 : vector<1x128xf32>
    %c64_i32_113 = arith.constant 64 : i32
    %220 = tpu.dynamic_rotate %205 by %c64_i32_113 dim 1 : vector<1x128xf32>, i32 -> vector<1x128xf32>
    %221 = arith.addf %219, %220 : vector<1x128xf32>
    %c72_i32_114 = arith.constant 72 : i32
    %222 = tpu.dynamic_rotate %205 by %c72_i32_114 dim 1 : vector<1x128xf32>, i32 -> vector<1x128xf32>
    %223 = arith.addf %221, %222 : vector<1x128xf32>
    %c80_i32_115 = arith.constant 80 : i32
    %224 = tpu.dynamic_rotate %205 by %c80_i32_115 dim 1 : vector<1x128xf32>, i32 -> vector<1x128xf32>
    %225 = arith.addf %223, %224 : vector<1x128xf32>
    %c88_i32_116 = arith.constant 88 : i32
    %226 = tpu.dynamic_rotate %205 by %c88_i32_116 dim 1 : vector<1x128xf32>, i32 -> vector<1x128xf32>
    %227 = arith.addf %225, %226 : vector<1x128xf32>
    %c96_i32_117 = arith.constant 96 : i32
    %228 = tpu.dynamic_rotate %205 by %c96_i32_117 dim 1 : vector<1x128xf32>, i32 -> vector<1x128xf32>
    %229 = arith.addf %227, %228 : vector<1x128xf32>
    %c104_i32_118 = arith.constant 104 : i32
    %230 = tpu.dynamic_rotate %205 by %c104_i32_118 dim 1 : vector<1x128xf32>, i32 -> vector<1x128xf32>
    %231 = arith.addf %229, %230 : vector<1x128xf32>
    %c112_i32_119 = arith.constant 112 : i32
    %232 = tpu.dynamic_rotate %205 by %c112_i32_119 dim 1 : vector<1x128xf32>, i32 -> vector<1x128xf32>
    %233 = arith.addf %231, %232 : vector<1x128xf32>
    %c120_i32_120 = arith.constant 120 : i32
    %234 = tpu.dynamic_rotate %205 by %c120_i32_120 dim 1 : vector<1x128xf32>, i32 -> vector<1x128xf32>
    %235 = arith.addf %233, %234 : vector<1x128xf32>
    %cst_121 = arith.constant 0.001953125 : f32
    %236 = vector.broadcast %cst_121 : f32 to vector<1x128xf32>
    %237 = arith.mulf %235, %236 : vector<1x128xf32>
    %238 = vector.broadcast %237 : vector<1x128xf32> to vector<16x128xf32>
    %239 = arith.subf %176, %238 : vector<16x128xf32>
    %240 = vector.broadcast %237 : vector<1x128xf32> to vector<16x128xf32>
    %241 = arith.subf %198, %240 : vector<16x128xf32>
    %cst_122 = arith.constant 0.000000e+00 : f32
    %242 = vector.broadcast %cst_122 : f32 to vector<1x128xf32>
    %243 = arith.mulf %239, %239 : vector<16x128xf32>
    %cst_123 = arith.constant dense<0.000000e+00> : vector<128xf32>
    %244 = vector.multi_reduction <add>, %243, %cst_123 [0] : vector<16x128xf32> to vector<128xf32>
    %245 = vector.shape_cast %244 : vector<128xf32> to vector<1x128xf32>
    %246 = arith.addf %242, %245 : vector<1x128xf32>
    %247 = arith.mulf %241, %241 : vector<16x128xf32>
    %cst_124 = arith.constant dense<0.000000e+00> : vector<128xf32>
    %248 = vector.multi_reduction <add>, %247, %cst_124 [0] : vector<16x128xf32> to vector<128xf32>
    %249 = vector.shape_cast %248 : vector<128xf32> to vector<1x128xf32>
    %250 = arith.addf %246, %249 : vector<1x128xf32>
    %c8_i32_125 = arith.constant 8 : i32
    %251 = tpu.dynamic_rotate %250 by %c8_i32_125 dim 1 : vector<1x128xf32>, i32 -> vector<1x128xf32>
    %252 = arith.addf %250, %251 : vector<1x128xf32>
    %c16_i32_126 = arith.constant 16 : i32
    %253 = tpu.dynamic_rotate %250 by %c16_i32_126 dim 1 : vector<1x128xf32>, i32 -> vector<1x128xf32>
    %254 = arith.addf %252, %253 : vector<1x128xf32>
    %c24_i32_127 = arith.constant 24 : i32
    %255 = tpu.dynamic_rotate %250 by %c24_i32_127 dim 1 : vector<1x128xf32>, i32 -> vector<1x128xf32>
    %256 = arith.addf %254, %255 : vector<1x128xf32>
    %c32_i32_128 = arith.constant 32 : i32
    %257 = tpu.dynamic_rotate %250 by %c32_i32_128 dim 1 : vector<1x128xf32>, i32 -> vector<1x128xf32>
    %258 = arith.addf %256, %257 : vector<1x128xf32>
    %c40_i32_129 = arith.constant 40 : i32
    %259 = tpu.dynamic_rotate %250 by %c40_i32_129 dim 1 : vector<1x128xf32>, i32 -> vector<1x128xf32>
    %260 = arith.addf %258, %259 : vector<1x128xf32>
    %c48_i32_130 = arith.constant 48 : i32
    %261 = tpu.dynamic_rotate %250 by %c48_i32_130 dim 1 : vector<1x128xf32>, i32 -> vector<1x128xf32>
    %262 = arith.addf %260, %261 : vector<1x128xf32>
    %c56_i32_131 = arith.constant 56 : i32
    %263 = tpu.dynamic_rotate %250 by %c56_i32_131 dim 1 : vector<1x128xf32>, i32 -> vector<1x128xf32>
    %264 = arith.addf %262, %263 : vector<1x128xf32>
    %c64_i32_132 = arith.constant 64 : i32
    %265 = tpu.dynamic_rotate %250 by %c64_i32_132 dim 1 : vector<1x128xf32>, i32 -> vector<1x128xf32>
    %266 = arith.addf %264, %265 : vector<1x128xf32>
    %c72_i32_133 = arith.constant 72 : i32
    %267 = tpu.dynamic_rotate %250 by %c72_i32_133 dim 1 : vector<1x128xf32>, i32 -> vector<1x128xf32>
    %268 = arith.addf %266, %267 : vector<1x128xf32>
    %c80_i32_134 = arith.constant 80 : i32
    %269 = tpu.dynamic_rotate %250 by %c80_i32_134 dim 1 : vector<1x128xf32>, i32 -> vector<1x128xf32>
    %270 = arith.addf %268, %269 : vector<1x128xf32>
    %c88_i32_135 = arith.constant 88 : i32
    %271 = tpu.dynamic_rotate %250 by %c88_i32_135 dim 1 : vector<1x128xf32>, i32 -> vector<1x128xf32>
    %272 = arith.addf %270, %271 : vector<1x128xf32>
    %c96_i32_136 = arith.constant 96 : i32
    %273 = tpu.dynamic_rotate %250 by %c96_i32_136 dim 1 : vector<1x128xf32>, i32 -> vector<1x128xf32>
    %274 = arith.addf %272, %273 : vector<1x128xf32>
    %c104_i32_137 = arith.constant 104 : i32
    %275 = tpu.dynamic_rotate %250 by %c104_i32_137 dim 1 : vector<1x128xf32>, i32 -> vector<1x128xf32>
    %276 = arith.addf %274, %275 : vector<1x128xf32>
    %c112_i32_138 = arith.constant 112 : i32
    %277 = tpu.dynamic_rotate %250 by %c112_i32_138 dim 1 : vector<1x128xf32>, i32 -> vector<1x128xf32>
    %278 = arith.addf %276, %277 : vector<1x128xf32>
    %c120_i32_139 = arith.constant 120 : i32
    %279 = tpu.dynamic_rotate %250 by %c120_i32_139 dim 1 : vector<1x128xf32>, i32 -> vector<1x128xf32>
    %280 = arith.addf %278, %279 : vector<1x128xf32>
    %cst_140 = arith.constant 0.001953125 : f32
    %281 = vector.broadcast %cst_140 : f32 to vector<1x128xf32>
    %282 = arith.mulf %280, %281 : vector<1x128xf32>
    %c0_141 = arith.constant 0 : index
    %c0_142 = arith.constant 0 : index
    %283 = vector.load %arg5[%c0_141, %c0_142] : memref<1x128xf32, #tpu.memory_space<vmem>>, vector<1x128xf32>
    %cst_143 = arith.constant 9.99999974E-6 : f32
    %284 = vector.broadcast %cst_143 : f32 to vector<1x128xf32>
    %285 = arith.addf %282, %284 : vector<1x128xf32>
    %286 = math.rsqrt %285 : vector<1x128xf32>
    %287 = arith.mulf %283, %286 : vector<1x128xf32>
    %288 = vector.broadcast %287 : vector<1x128xf32> to vector<16x128xf32>
    %289 = arith.mulf %239, %288 : vector<16x128xf32>
    %c0_144 = arith.constant 0 : index
    %c0_145 = arith.constant 0 : index
    %290 = vector.load %arg6[%c0_144, %c0_145] : memref<1x128xf32, #tpu.memory_space<vmem>>, vector<1x128xf32>
    %291 = vector.broadcast %290 : vector<1x128xf32> to vector<16x128xf32>
    %292 = arith.addf %289, %291 : vector<16x128xf32>
    %cst_146 = arith.constant 0.000000e+00 : f32
    %293 = vector.broadcast %cst_146 : f32 to vector<16x128xf32>
    %294 = arith.maximumf %292, %293 : vector<16x128xf32>
    %c0_147 = arith.constant 0 : index
    %c0_148 = arith.constant 0 : index
    %c0_149 = arith.constant 0 : index
    %295 = vector.load %arg7[%c0_147, %c0_148, %c0_149] : memref<2x16x128xf32, #tpu.memory_space<vmem>>, vector<1x16x128xf32>
    %296 = vector.shape_cast %295 : vector<1x16x128xf32> to vector<16x128xf32>
    %297 = vector.shape_cast %294 : vector<16x128xf32> to vector<1x16x128xf32>
    tpu.vector_store %arg7[%c0_147, %c0_148, %c0_149], %297 {strides = array<i32>} : memref<2x16x128xf32, #tpu.memory_space<vmem>>, vector<1x16x128xf32>,
    %298 = vector.broadcast %287 : vector<1x128xf32> to vector<16x128xf32>
    %299 = arith.mulf %241, %298 : vector<16x128xf32>
    %c0_150 = arith.constant 0 : index
    %c0_151 = arith.constant 0 : index
    %300 = vector.load %arg6[%c0_150, %c0_151] : memref<1x128xf32, #tpu.memory_space<vmem>>, vector<1x128xf32>
    %301 = vector.broadcast %300 : vector<1x128xf32> to vector<16x128xf32>
    %302 = arith.addf %299, %301 : vector<16x128xf32>
    %cst_152 = arith.constant 0.000000e+00 : f32
    %303 = vector.broadcast %cst_152 : f32 to vector<16x128xf32>
    %304 = arith.maximumf %302, %303 : vector<16x128xf32>
    %c1_153 = arith.constant 1 : index
    %c0_154 = arith.constant 0 : index
    %c0_155 = arith.constant 0 : index
    %305 = vector.load %arg7[%c1_153, %c0_154, %c0_155] : memref<2x16x128xf32, #tpu.memory_space<vmem>>, vector<1x16x128xf32>
    %306 = vector.shape_cast %305 : vector<1x16x128xf32> to vector<16x128xf32>
    %307 = vector.shape_cast %304 : vector<16x128xf32> to vector<1x16x128xf32>
    tpu.vector_store %arg7[%c1_153, %c0_154, %c0_155], %307 {strides = array<i32>} : memref<2x16x128xf32, #tpu.memory_space<vmem>>, vector<1x16x128xf32>,
    return
  }
}

</mosaic_0001>

<llo_original>
// kernel: tpu_custom_call.1
$region0: #{tpu_custom_call.1}
  #allocation0 [shape = 'u32[]', space=smem, size = 0x4, offset = 0x4, fixed_abs, tag = 'smem constant byte address 0x4 - core index']
  #allocation1 [shape = 'u32[144,128]{1,0:T(1,128)}', space=vmem, size = 0x12000, scoped, tag = 'internal scratch']
  %s0 = inlined_call_operand.hbm [shape: f32[2,16,64], index: 0, kind: input, shape index: {}]
  %s1 = inlined_call_operand.hbm [shape: bf16[3,64,128], index: 1, kind: input, shape index: {}]
  %s2 = inlined_call_operand.hbm [shape: bf16[3,128,128], index: 2, kind: input, shape index: {}]
  %s3 = inlined_call_operand.vmem [shape: f32[1,128], index: 3, kind: input, shape index: {}]
  %s4 = inlined_call_operand.vmem [shape: f32[1,128], index: 4, kind: input, shape index: {}]
  %s5 = inlined_call_operand.vmem [shape: f32[1,128], index: 5, kind: input, shape index: {}]
  %s6 = inlined_call_operand.vmem [shape: f32[1,128], index: 6, kind: input, shape index: {}]
  %s7 = inlined_call_operand.hbm [shape: f32[2,16,128], index: 7, kind: output, shape index: {}]
  %s8 = sld [smem:[#allocation0]]
  $region50: #{tpu_custom_call.1} parent=0
    _
  %s10 = ssub.s32 1, %s8
  %s11 = scalar_select 0, %s10, %s8
  $region1: #{tpu_custom_call.1} parent=0
    #allocation2 [shape = 'u8[16384]{0}', space=vmem, size = 0x4000, scoped, tag = 'input window, operand 0, single buffered']
    #allocation3 [shape = 's32[1]{0}', space=sflag, size = 0x4, scoped, tag = 'scoped memory for tpu_custom_call.1']
    #allocation4 [shape = 's32[1]{0}', space=sflag, size = 0x4, scoped, tag = 'scoped memory for tpu_custom_call.1']
    #allocation5 [shape = 'u8[49152]{0}', space=vmem, size = 0xc000, scoped, tag = 'input window, operand 1, single buffered']
    #allocation6 [shape = 's32[1]{0}', space=sflag, size = 0x4, scoped, tag = 'scoped memory for tpu_custom_call.1']
    #allocation7 [shape = 'u8[98304]{0}', space=vmem, size = 0x18000, scoped, tag = 'input window, operand 2, single buffered']
    #allocation8 [shape = 'u8[16384]{0}', space=vmem, size = 0x4000, scoped, tag = 'output window, operand 0, single buffered']
    %12 = vsyncpa [#allocation3], 0
    %13 = vsyncpa [#allocation6], 0
    %14 = vsyncpa [#allocation4], 0
    // Predicated region
    $region2: #{tpu_custom_call.1} parent=1 // pred_check
      _
    $region3: #{tpu_custom_call.1} parent=1 // pred_check_branch
      %16 = sbr.rel (0) target = $region5
    $region4: #{tpu_custom_call.1} parent=1 // pred_region
      %s18 = ssub.s32 512, 512
      %19 = vsyncadd [#allocation3], %s18
      %s20 = sshll.u32 [#allocation2], 4
      %s21 = int_to_ptr.vmem [resolvable:$true] %s20
      %26 = dma.hbm_to_vmem [thread:$0]  %s0, 512, %s21, [#allocation3], 128, 128, 8
    $region5: #{tpu_custom_call.1} parent=1 // pred_fallthru
      _
    // Predicated region
    $region6: #{tpu_custom_call.1} parent=1 // pred_check
      _
    $region7: #{tpu_custom_call.1} parent=1 // pred_check_branch
      %28 = sbr.rel (0) target = $region9
    $region8: #{tpu_custom_call.1} parent=1 // pred_region
      %s30 = ssub.s32 1536, 1536
      %31 = vsyncadd [#allocation6], %s30
      %s32 = sshll.u32 [#allocation5], 4
      %s33 = int_to_ptr.vmem [resolvable:$true] %s32
      %38 = dma.hbm_to_vmem [thread:$0]  %s1, 1536, %s33, [#allocation6], 64, 64, 4
    $region9: #{tpu_custom_call.1} parent=1 // pred_fallthru
      _
    // Predicated region
    $region10: #{tpu_custom_call.1} parent=1 // pred_check
      _
    $region11: #{tpu_custom_call.1} parent=1 // pred_check_branch
      %40 = sbr.rel (0) target = $region13
    $region12: #{tpu_custom_call.1} parent=1 // pred_region
      %s42 = ssub.s32 3072, 3072
      %43 = vsyncadd [#allocation6], %s42
      %s44 = sshll.u32 [#allocation7], 4
      %s45 = int_to_ptr.vmem [resolvable:$true] %s44
      %50 = dma.hbm_to_vmem [thread:$0]  %s2, 3072, %s45, [#allocation6], 64, 64, 4
    $region13: #{tpu_custom_call.1} parent=1 // pred_fallthru
      _
    // Predicated region
    $region14: #{tpu_custom_call.1} parent=1 // pred_check
      _
    $region15: #{tpu_custom_call.1} parent=1 // pred_check_branch
      %52 = sbr.rel (0) target = $region17
    $region16: #{tpu_custom_call.1} parent=1 // pred_region
      _
    $region17: #{tpu_custom_call.1} parent=1 // pred_fallthru
      _
    // Predicated region
    $region18: #{tpu_custom_call.1} parent=1 // pred_check
      _
    $region19: #{tpu_custom_call.1} parent=1 // pred_check_branch
      %54 = sbr.rel (0) target = $region21
    $region20: #{tpu_custom_call.1} parent=1 // pred_region
      _
    $region21: #{tpu_custom_call.1} parent=1 // pred_fallthru
      _
    // Predicated region
    $region22: #{tpu_custom_call.1} parent=1 // pred_check
      _
    $region23: #{tpu_custom_call.1} parent=1 // pred_check_branch
      %56 = sbr.rel (0) target = $region25
    $region24: #{tpu_custom_call.1} parent=1 // pred_region
      _
    $region25: #{tpu_custom_call.1} parent=1 // pred_fallthru
      _
    // Predicated region
    $region26: #{tpu_custom_call.1} parent=1 // pred_check
      _
    $region27: #{tpu_custom_call.1} parent=1 // pred_check_branch
      %58 = sbr.rel (0) target = $region29
    $region28: #{tpu_custom_call.1} parent=1 // pred_region
      _
    $region29: #{tpu_custom_call.1} parent=1 // pred_fallthru
      _
    // Predicated region
    $region30: #{tpu_custom_call.1} parent=1 // pred_check
      _
    $region31: #{tpu_custom_call.1} parent=1 // pred_check_branch
      %60 = sbr.rel (0) target = $region33
    $region32: #{tpu_custom_call.1} parent=1 // pred_region
      %61 = dma.done [#allocation3], 512
    $region33: #{tpu_custom_call.1} parent=1 // pred_fallthru
      _
    // Predicated region
    $region34: #{tpu_custom_call.1} parent=1 // pred_check
      _
    $region35: #{tpu_custom_call.1} parent=1 // pred_check_branch
      %63 = sbr.rel (0) target = $region37
    $region36: #{tpu_custom_call.1} parent=1 // pred_region
      %64 = dma.done [#allocation6], 1536
    $region37: #{tpu_custom_call.1} parent=1 // pred_fallthru
      _
    // Predicated region
    $region38: #{tpu_custom_call.1} parent=1 // pred_check
      _
    $region39: #{tpu_custom_call.1} parent=1 // pred_check_branch
      %66 = sbr.rel (0) target = $region41
    $region40: #{tpu_custom_call.1} parent=1 // pred_region
      %67 = dma.done [#allocation6], 3072
    $region41: #{tpu_custom_call.1} parent=1 // pred_fallthru
      _
    %v69 = vld [vmem:[#allocation2] sm:$0xff]
    %v70 = vld [vmem:[#allocation2 + $0x8] sm:$0xff]
    %v71 = vpack.c.bf16 %v70, %v69
    %v72 = vld [vmem:[#allocation5] sm:$0xf]
    %v73 = vld [vmem:[#allocation5 + $0x4] sm:$0xf]
    %v74 = vld [vmem:[#allocation5 + $0x8] sm:$0xf]
    %v75 = vld [vmem:[#allocation5 + $0xc] sm:$0xf]
    %v76 = vld [vmem:[#allocation5 + $0x10] sm:$0xf]
    %v77 = vld [vmem:[#allocation5 + $0x14] sm:$0xf]
    %v78 = vld [vmem:[#allocation5 + $0x18] sm:$0xf]
    %v79 = vld [vmem:[#allocation5 + $0x1c] sm:$0xf]
    %v88 = vunpack.c.l.b16 %v72
    %v89 = vunpack.c.l.b16 %v73
    %v90 = vunpack.c.l.b16 %v74
    %v91 = vunpack.c.l.b16 %v75
    %v92 = vunpack.c.l.b16 %v76
    %v93 = vunpack.c.l.b16 %v77
    %v94 = vunpack.c.l.b16 %v78
    %v95 = vunpack.c.l.b16 %v79
    %v96 = vpack.c.b16 %v89, %v88
    %v97 = vpack.c.b16 %v91, %v90
    %v98 = vpack.c.b16 %v93, %v92
    %v99 = vpack.c.b16 %v95, %v94
    %vm104 = vcmask 523264
    %v106 = vsel %vm104, %v71, 0
    %108 = vmatprep.subr.bf16.mxu0 0
    %109 = vmatpush1.bf16.msra.mxu0 0
    %110 = vmatprep.subr.bf16.mxu0 0
    %111 = vmatpush1.bf16.msra.mxu0 0
    %112 = vmatprep.subr.bf16.mxu0 0
    %113 = vmatpush1.bf16.msra.mxu0 0
    %114 = vmatprep.subr.bf16.mxu0 0
    %115 = vmatpush1.bf16.msra.mxu0 0
    %116 = vmatprep.subr.bf16.mxu0 0
    %117 = vmatpush1.bf16.msra.mxu0 %v99
    %118 = vmatprep.subr.bf16.mxu0 0
    %119 = vmatpush1.bf16.msra.mxu0 %v98
    %120 = vmatprep.subr.bf16.mxu0 0
    %121 = vmatpush1.bf16.msra.mxu0 %v97
    %122 = vmatprep.subr.bf16.mxu0 0
    %123 = vmatpush1.bf16.msra.mxu0 %v96
    %124 = vmatprep.subr.bf16.mxu0 0
    %125 = vmatpush2.bf16.msra.mxu0 0
    %126 = vmatprep.subr.bf16.mxu0 0
    %127 = vmatpush2.bf16.msra.mxu0 0
    %128 = vmatprep.subr.bf16.mxu0 0
    %129 = vmatpush2.bf16.msra.mxu0 0
    %130 = vmatprep.subr.bf16.mxu0 0
    %131 = vmatpush2.bf16.msra.mxu0 0
    %132 = vmatprep.subr.bf16.mxu0 0
    %133 = vmatpush2.bf16.msra.mxu0 0
    %134 = vmatprep.subr.bf16.mxu0 0
    %135 = vmatpush2.bf16.msra.mxu0 0
    %136 = vmatprep.subr.bf16.mxu0 0
    %137 = vmatpush2.bf16.msra.mxu0 0
    %138 = vmatprep.subr.bf16.mxu0 0
    %139 = vmatpush2.bf16.msra.mxu0 0
    %140 = vmatprep.mubr.bf16.mxu0 0
    %141 = vmatmul.mubr.bf16.gmra.mxu0 %v106
    %v142 = vpop.f32.mrf.mxu0
    %v143 = vadd.f32 0.0, %v142
    %v144 = vpop.f32.mrf.mxu0
    %v145 = vpop.f32.mrf.mxu0
    %v146 = vadd.f32 0.0, %v145
    %v147 = vpop.f32.mrf.mxu0
    %148 = vdwg.mxu0
    %s149 = scalar_lea.vmem [#allocation5], 32
    %v150 = vld [vmem:[%s149] sm:$0xf]
    %v151 = vld [vmem:[%s149 + $0x4] sm:$0xf]
    %v152 = vld [vmem:[%s149 + $0x8] sm:$0xf]
    %v153 = vld [vmem:[%s149 + $0xc] sm:$0xf]
    %v154 = vld [vmem:[%s149 + $0x10] sm:$0xf]
    %v155 = vld [vmem:[%s149 + $0x14] sm:$0xf]
    %v156 = vld [vmem:[%s149 + $0x18] sm:$0xf]
    %v157 = vld [vmem:[%s149 + $0x1c] sm:$0xf]
    %s158 = scalar_lea.vmem [#allocation5], 64
    %v159 = vld [vmem:[%s158] sm:$0xf]
    %v160 = vld [vmem:[%s158 + $0x4] sm:$0xf]
    %v161 = vld [vmem:[%s158 + $0x8] sm:$0xf]
    %v162 = vld [vmem:[%s158 + $0xc] sm:$0xf]
    %v163 = vld [vmem:[%s158 + $0x10] sm:$0xf]
    %v164 = vld [vmem:[%s158 + $0x14] sm:$0xf]
    %v165 = vld [vmem:[%s158 + $0x18] sm:$0xf]
    %v166 = vld [vmem:[%s158 + $0x1c] sm:$0xf]
    %v175 = vunpack.c.l.b16 %v159
    %v176 = vunpack.c.l.b16 %v160
    %v177 = vunpack.c.l.b16 %v161
    %v178 = vunpack.c.l.b16 %v162
    %v179 = vunpack.c.l.b16 %v163
    %v180 = vunpack.c.l.b16 %v164
    %v181 = vunpack.c.l.b16 %v165
    %v182 = vunpack.c.l.b16 %v166
    %v183 = vpack.c.b16 %v176, %v175
    %v184 = vpack.c.b16 %v178, %v177
    %v185 = vpack.c.b16 %v180, %v179
    %v186 = vpack.c.b16 %v182, %v181
    %191 = vmatprep.subr.bf16.mxu0 0
    %192 = vmatpush1.bf16.msra.mxu0 0
    %193 = vmatprep.subr.bf16.mxu0 0
    %194 = vmatpush1.bf16.msra.mxu0 0
    %195 = vmatprep.subr.bf16.mxu0 0
    %196 = vmatpush1.bf16.msra.mxu0 0
    %197 = vmatprep.subr.bf16.mxu0 0
    %198 = vmatpush1.bf16.msra.mxu0 0
    %199 = vmatprep.subr.bf16.mxu0 0
    %200 = vmatpush1.bf16.msra.mxu0 %v186
    %201 = vmatprep.subr.bf16.mxu0 0
    %202 = vmatpush1.bf16.msra.mxu0 %v185
    %203 = vmatprep.subr.bf16.mxu0 0
    %204 = vmatpush1.bf16.msra.mxu0 %v184
    %205 = vmatprep.subr.bf16.mxu0 0
    %206 = vmatpush1.bf16.msra.mxu0 %v183
    %207 = vmatprep.subr.bf16.mxu0 0
    %208 = vmatpush2.bf16.msra.mxu0 0
    %209 = vmatprep.subr.bf16.mxu0 0
    %210 = vmatpush2.bf16.msra.mxu0 0
    %211 = vmatprep.subr.bf16.mxu0 0
    %212 = vmatpush2.bf16.msra.mxu0 0
    %213 = vmatprep.subr.bf16.mxu0 0
    %214 = vmatpush2.bf16.msra.mxu0 0
    %215 = vmatprep.subr.bf16.mxu0 0
    %216 = vmatpush2.bf16.msra.mxu0 0
    %217 = vmatprep.subr.bf16.mxu0 0
    %218 = vmatpush2.bf16.msra.mxu0 0
    %219 = vmatprep.subr.bf16.mxu0 0
    %220 = vmatpush2.bf16.msra.mxu0 0
    %221 = vmatprep.subr.bf16.mxu0 0
    %222 = vmatpush2.bf16.msra.mxu0 0
    %223 = vmatprep.mubr.bf16.mxu0 0
    %224 = vmatmul.mubr.bf16.gmra.mxu0 %v106
    %v225 = vpop.f32.mrf.mxu0
    %v226 = vadd.f32 0.0, %v225
    %v227 = vpop.f32.mrf.mxu0
    %v228 = vpop.f32.mrf.mxu0
    %v229 = vadd.f32 0.0, %v228
    %v230 = vpop.f32.mrf.mxu0
    %231 = vdwg.mxu0
    %v232 = vlaneseq
    %v233 = vshrl.u32 %v232, 7
    %v234 = vadd.s32 %v233, 8
    %vm235 = vcmp.eq.s32.totalorder %v233, 0
    %vm236 = vcmp.eq.s32.totalorder %v234, 0
    %v237 = vrot.slane %v143, 7
    %v238 = vrot.slane %v146, 7
    %vm239 = vcmp.lt.s32.totalorder %v233, 1
    %v240 = vsel %vm239, %v237, %v238
    %v241 = vsel %vm239, %v238, %v237
    %v242 = vsel %vm235, 0.0, %v241
    %v243 = vsel %vm236, 0.0, %v240
    %v252 = vunpack.c.l.b16 %v150
    %v253 = vunpack.c.l.b16 %v151
    %v254 = vunpack.c.l.b16 %v152
    %v255 = vunpack.c.l.b16 %v153
    %v256 = vunpack.c.l.b16 %v154
    %v257 = vunpack.c.l.b16 %v155
    %v258 = vunpack.c.l.b16 %v156
    %v259 = vunpack.c.l.b16 %v157
    %v260 = vpack.c.b16 %v253, %v252
    %v261 = vpack.c.b16 %v255, %v254
    %v262 = vpack.c.b16 %v257, %v256
    %v263 = vpack.c.b16 %v259, %v258
    %268 = vmatprep.subr.bf16.mxu0 0
    %269 = vmatpush1.bf16.msra.mxu0 0
    %270 = vmatprep.subr.bf16.mxu0 0
    %271 = vmatpush1.bf16.msra.mxu0 0
    %272 = vmatprep.subr.bf16.mxu0 0
    %273 = vmatpush1.bf16.msra.mxu0 0
    %274 = vmatprep.subr.bf16.mxu0 0
    %275 = vmatpush1.bf16.msra.mxu0 0
    %276 = vmatprep.subr.bf16.mxu0 0
    %277 = vmatpush1.bf16.msra.mxu0 %v263
    %278 = vmatprep.subr.bf16.mxu0 0
    %279 = vmatpush1.bf16.msra.mxu0 %v262
    %280 = vmatprep.subr.bf16.mxu0 0
    %281 = vmatpush1.bf16.msra.mxu0 %v261
    %282 = vmatprep.subr.bf16.mxu0 0
    %283 = vmatpush1.bf16.msra.mxu0 %v260
    %284 = vmatprep.subr.bf16.mxu0 0
    %285 = vmatpush2.bf16.msra.mxu0 0
    %286 = vmatprep.subr.bf16.mxu0 0
    %287 = vmatpush2.bf16.msra.mxu0 0
    %288 = vmatprep.subr.bf16.mxu0 0
    %289 = vmatpush2.bf16.msra.mxu0 0
    %290 = vmatprep.subr.bf16.mxu0 0
    %291 = vmatpush2.bf16.msra.mxu0 0
    %292 = vmatprep.subr.bf16.mxu0 0
    %293 = vmatpush2.bf16.msra.mxu0 0
    %294 = vmatprep.subr.bf16.mxu0 0
    %295 = vmatpush2.bf16.msra.mxu0 0
    %296 = vmatprep.subr.bf16.mxu0 0
    %297 = vmatpush2.bf16.msra.mxu0 0
    %298 = vmatprep.subr.bf16.mxu0 0
    %299 = vmatpush2.bf16.msra.mxu0 0
    %300 = vmatprep.mubr.bf16.mxu0 0
    %301 = vmatmul.mubr.bf16.gmra.mxu0 %v106
    %v302 = vpop.f32.mrf.mxu0
    %v303 = vadd.f32 %v242, %v302
    %v304 = vpop.f32.mrf.mxu0
    %v305 = vpop.f32.mrf.mxu0
    %v306 = vadd.f32 %v243, %v305
    %v307 = vpop.f32.mrf.mxu0
    %308 = vdwg.mxu0
    %vm309 = vcmp.eq.s32.totalorder %v233, 15
    %vm310 = vcmp.eq.s32.totalorder %v234, 15
    %v311 = vrot.slane %v226, 1
    %v312 = vrot.slane %v229, 1
    %vm313 = vcmp.lt.s32.totalorder %v233, 7
    %v314 = vsel %vm313, %v311, %v312
    %v315 = vsel %vm313, %v312, %v311
    %v316 = vsel %vm309, 0.0, %v314
    %v317 = vsel %vm310, 0.0, %v315
    %v318 = vadd.f32 %v303, %v316
    %v319 = vadd.f32 %v306, %v317
    %s320 = scalar_lea.vmem [#allocation2], 16
    %v321 = vld [vmem:[%s320] sm:$0xff]
    %v322 = vld [vmem:[%s320 + $0x8] sm:$0xff]
    %v323 = vpack.c.bf16 %v322, %v321
    %v325 = vsel %vm104, %v323, 0
    %327 = vmatprep.subr.bf16.mxu0 0
    %328 = vmatpush1.bf16.msra.mxu0 0
    %329 = vmatprep.subr.bf16.mxu0 0
    %330 = vmatpush1.bf16.msra.mxu0 0
    %331 = vmatprep.subr.bf16.mxu0 0
    %332 = vmatpush1.bf16.msra.mxu0 0
    %333 = vmatprep.subr.bf16.mxu0 0
    %334 = vmatpush1.bf16.msra.mxu0 0
    %335 = vmatprep.subr.bf16.mxu0 0
    %336 = vmatpush1.bf16.msra.mxu0 %v99
    %337 = vmatprep.subr.bf16.mxu0 0
    %338 = vmatpush1.bf16.msra.mxu0 %v98
    %339 = vmatprep.subr.bf16.mxu0 0
    %340 = vmatpush1.bf16.msra.mxu0 %v97
    %341 = vmatprep.subr.bf16.mxu0 0
    %342 = vmatpush1.bf16.msra.mxu0 %v96
    %343 = vmatprep.subr.bf16.mxu0 0
    %344 = vmatpush2.bf16.msra.mxu0 0
    %345 = vmatprep.subr.bf16.mxu0 0
    %346 = vmatpush2.bf16.msra.mxu0 0
    %347 = vmatprep.subr.bf16.mxu0 0
    %348 = vmatpush2.bf16.msra.mxu0 0
    %349 = vmatprep.subr.bf16.mxu0 0
    %350 = vmatpush2.bf16.msra.mxu0 0
    %351 = vmatprep.subr.bf16.mxu0 0
    %352 = vmatpush2.bf16.msra.mxu0 0
    %353 = vmatprep.subr.bf16.mxu0 0
    %354 = vmatpush2.bf16.msra.mxu0 0
    %355 = vmatprep.subr.bf16.mxu0 0
    %356 = vmatpush2.bf16.msra.mxu0 0
    %357 = vmatprep.subr.bf16.mxu0 0
    %358 = vmatpush2.bf16.msra.mxu0 0
    %359 = vmatprep.mubr.bf16.mxu0 0
    %360 = vmatmul.mubr.bf16.gmra.mxu0 %v325
    %v361 = vpop.f32.mrf.mxu0
    %v362 = vadd.f32 0.0, %v361
    %v363 = vpop.f32.mrf.mxu0
    %v364 = vpop.f32.mrf.mxu0
    %v365 = vadd.f32 0.0, %v364
    %v366 = vpop.f32.mrf.mxu0
    %367 = vdwg.mxu0
    %368 = vmatprep.subr.bf16.mxu0 0
    %369 = vmatpush1.bf16.msra.mxu0 0
    %370 = vmatprep.subr.bf16.mxu0 0
    %371 = vmatpush1.bf16.msra.mxu0 0
    %372 = vmatprep.subr.bf16.mxu0 0
    %373 = vmatpush1.bf16.msra.mxu0 0
    %374 = vmatprep.subr.bf16.mxu0 0
    %375 = vmatpush1.bf16.msra.mxu0 0
    %376 = vmatprep.subr.bf16.mxu0 0
    %377 = vmatpush1.bf16.msra.mxu0 %v186
    %378 = vmatprep.subr.bf16.mxu0 0
    %379 = vmatpush1.bf16.msra.mxu0 %v185
    %380 = vmatprep.subr.bf16.mxu0 0
    %381 = vmatpush1.bf16.msra.mxu0 %v184
    %382 = vmatprep.subr.bf16.mxu0 0
    %383 = vmatpush1.bf16.msra.mxu0 %v183
    %384 = vmatprep.subr.bf16.mxu0 0
    %385 = vmatpush2.bf16.msra.mxu0 0
    %386 = vmatprep.subr.bf16.mxu0 0
    %387 = vmatpush2.bf16.msra.mxu0 0
    %388 = vmatprep.subr.bf16.mxu0 0
    %389 = vmatpush2.bf16.msra.mxu0 0
    %390 = vmatprep.subr.bf16.mxu0 0
    %391 = vmatpush2.bf16.msra.mxu0 0
    %392 = vmatprep.subr.bf16.mxu0 0
    %393 = vmatpush2.bf16.msra.mxu0 0
    %394 = vmatprep.subr.bf16.mxu0 0
    %395 = vmatpush2.bf16.msra.mxu0 0
    %396 = vmatprep.subr.bf16.mxu0 0
    %397 = vmatpush2.bf16.msra.mxu0 0
    %398 = vmatprep.subr.bf16.mxu0 0
    %399 = vmatpush2.bf16.msra.mxu0 0
    %400 = vmatprep.mubr.bf16.mxu0 0
    %401 = vmatmul.mubr.bf16.gmra.mxu0 %v325
    %v402 = vpop.f32.mrf.mxu0
    %v403 = vadd.f32 0.0, %v402
    %v404 = vpop.f32.mrf.mxu0
    %v405 = vpop.f32.mrf.mxu0
    %v406 = vadd.f32 0.0, %v405
    %v407 = vpop.f32.mrf.mxu0
    %408 = vdwg.mxu0
    %v409 = vrot.slane %v362, 7
    %v410 = vrot.slane %v365, 7
    %v411 = vsel %vm239, %v409, %v410
    %v412 = vsel %vm239, %v410, %v409
    %v413 = vsel %vm235, 0.0, %v412
    %v414 = vsel %vm236, 0.0, %v411
    %415 = vmatprep.subr.bf16.mxu0 0
    %416 = vmatpush1.bf16.msra.mxu0 0
    %417 = vmatprep.subr.bf16.mxu0 0
    %418 = vmatpush1.bf16.msra.mxu0 0
    %419 = vmatprep.subr.bf16.mxu0 0
    %420 = vmatpush1.bf16.msra.mxu0 0
    %421 = vmatprep.subr.bf16.mxu0 0
    %422 = vmatpush1.bf16.msra.mxu0 0
    %423 = vmatprep.subr.bf16.mxu0 0
    %424 = vmatpush1.bf16.msra.mxu0 %v263
    %425 = vmatprep.subr.bf16.mxu0 0
    %426 = vmatpush1.bf16.msra.mxu0 %v262
    %427 = vmatprep.subr.bf16.mxu0 0
    %428 = vmatpush1.bf16.msra.mxu0 %v261
    %429 = vmatprep.subr.bf16.mxu0 0
    %430 = vmatpush1.bf16.msra.mxu0 %v260
    %431 = vmatprep.subr.bf16.mxu0 0
    %432 = vmatpush2.bf16.msra.mxu0 0
    %433 = vmatprep.subr.bf16.mxu0 0
    %434 = vmatpush2.bf16.msra.mxu0 0
    %435 = vmatprep.subr.bf16.mxu0 0
    %436 = vmatpush2.bf16.msra.mxu0 0
    %437 = vmatprep.subr.bf16.mxu0 0
    %438 = vmatpush2.bf16.msra.mxu0 0
    %439 = vmatprep.subr.bf16.mxu0 0
    %440 = vmatpush2.bf16.msra.mxu0 0
    %441 = vmatprep.subr.bf16.mxu0 0
    %442 = vmatpush2.bf16.msra.mxu0 0
    %443 = vmatprep.subr.bf16.mxu0 0
    %444 = vmatpush2.bf16.msra.mxu0 0
    %445 = vmatprep.subr.bf16.mxu0 0
    %446 = vmatpush2.bf16.msra.mxu0 0
    %447 = vmatprep.mubr.bf16.mxu0 0
    %448 = vmatmul.mubr.bf16.gmra.mxu0 %v325
    %v449 = vpop.f32.mrf.mxu0
    %v450 = vadd.f32 %v413, %v449
    %v451 = vpop.f32.mrf.mxu0
    %v452 = vpop.f32.mrf.mxu0
    %v453 = vadd.f32 %v414, %v452
    %v454 = vpop.f32.mrf.mxu0
    %455 = vdwg.mxu0
    %v456 = vrot.slane %v403, 1
    %v457 = vrot.slane %v406, 1
    %v458 = vsel %vm313, %v456, %v457
    %v459 = vsel %vm313, %v457, %v456
    %v460 = vsel %vm309, 0.0, %v458
    %v461 = vsel %vm310, 0.0, %v459
    %v462 = vadd.f32 %v450, %v460
    %v463 = vadd.f32 %v453, %v461
    %v464 = vadd.f32 %v318, %v319
    %v465 = vrot.slane %v464, 4
    %v466 = vadd.f32 %v464, %v465
    %v467 = vrot.slane %v466, 2
    %v468 = vadd.f32 %v466, %v467
    %v469 = vrot.slane %v468, 1
    %v470 = vadd.f32 %v468, %v469
    %v471 = vadd.f32 %v470, 0.0
    %v472 = vadd.f32 %v462, %v463
    %v473 = vrot.slane %v472, 4
    %v474 = vadd.f32 %v472, %v473
    %v475 = vrot.slane %v474, 2
    %v476 = vadd.f32 %v474, %v475
    %v477 = vrot.slane %v476, 1
    %v478 = vadd.f32 %v476, %v477
    %v479 = vadd.f32 %v471, %v478
    %480 = vrot.lane.b32.xlu0 %v479, 8
    %v481 = vpop.permute.xlu0 %480
    %v482 = vadd.f32 %v479, %v481
    %483 = vrot.lane.b32.xlu0 %v479, 16
    %v484 = vpop.permute.xlu0 %483
    %v485 = vadd.f32 %v482, %v484
    %486 = vrot.lane.b32.xlu0 %v479, 24
    %v487 = vpop.permute.xlu0 %486
    %v488 = vadd.f32 %v485, %v487
    %489 = vrot.lane.b32.xlu0 %v479, 32
    %v490 = vpop.permute.xlu0 %489
    %v491 = vadd.f32 %v488, %v490
    %492 = vrot.lane.b32.xlu0 %v479, 40
    %v493 = vpop.permute.xlu0 %492
    %v494 = vadd.f32 %v491, %v493
    %495 = vrot.lane.b32.xlu0 %v479, 48
    %v496 = vpop.permute.xlu0 %495
    %v497 = vadd.f32 %v494, %v496
    %498 = vrot.lane.b32.xlu0 %v479, 56
    %v499 = vpop.permute.xlu0 %498
    %v500 = vadd.f32 %v497, %v499
    %501 = vrot.lane.b32.xlu0 %v479, 64
    %v502 = vpop.permute.xlu0 %501
    %v503 = vadd.f32 %v500, %v502
    %504 = vrot.lane.b32.xlu0 %v479, 72
    %v505 = vpop.permute.xlu0 %504
    %v506 = vadd.f32 %v503, %v505
    %507 = vrot.lane.b32.xlu0 %v479, 80
    %v508 = vpop.permute.xlu0 %507
    %v509 = vadd.f32 %v506, %v508
    %510 = vrot.lane.b32.xlu0 %v479, 88
    %v511 = vpop.permute.xlu0 %510
    %v512 = vadd.f32 %v509, %v511
    %513 = vrot.lane.b32.xlu0 %v479, 96
    %v514 = vpop.permute.xlu0 %513
    %v515 = vadd.f32 %v512, %v514
    %516 = vrot.lane.b32.xlu0 %v479, 104
    %v517 = vpop.permute.xlu0 %516
    %v518 = vadd.f32 %v515, %v517
    %519 = vrot.lane.b32.xlu0 %v479, 112
    %v520 = vpop.permute.xlu0 %519
    %v521 = vadd.f32 %v518, %v520
    %522 = vrot.lane.b32.xlu0 %v479, 120
    %v523 = vpop.permute.xlu0 %522
    %v524 = vadd.f32 %v521, %v523
    %v525 = vmul.f32 %v524, 0.001953125
    %v526 = vlaneseq
    %v527 = vshrl.u32 %v526, 7
    %v528 = vsub.s32 0, %v527
    %v529 = vrot.slane %v525, %v528
    %v530 = vsub.f32 %v318, %v529
    %v531 = vsub.f32 %v319, %v529
    %v532 = vsub.f32 %v462, %v529
    %v533 = vsub.f32 %v463, %v529
    %v534 = vmul.f32 %v530, %v530
    %v535 = vmul.f32 %v531, %v531
    %v536 = vadd.f32 %v534, %v535
    %v537 = vrot.slane %v536, 4
    %v538 = vadd.f32 %v536, %v537
    %v539 = vrot.slane %v538, 2
    %v540 = vadd.f32 %v538, %v539
    %v541 = vrot.slane %v540, 1
    %v542 = vadd.f32 %v540, %v541
    %v543 = vadd.f32 %v542, 0.0
    %v544 = vmul.f32 %v532, %v532
    %v545 = vmul.f32 %v533, %v533
    %v546 = vadd.f32 %v544, %v545
    %v547 = vrot.slane %v546, 4
    %v548 = vadd.f32 %v546, %v547
    %v549 = vrot.slane %v548, 2
    %v550 = vadd.f32 %v548, %v549
    %v551 = vrot.slane %v550, 1
    %v552 = vadd.f32 %v550, %v551
    %v553 = vadd.f32 %v543, %v552
    %554 = vrot.lane.b32.xlu0 %v553, 8
    %v555 = vpop.permute.xlu0 %554
    %v556 = vadd.f32 %v553, %v555
    %557 = vrot.lane.b32.xlu0 %v553, 16
    %v558 = vpop.permute.xlu0 %557
    %v559 = vadd.f32 %v556, %v558
    %560 = vrot.lane.b32.xlu0 %v553, 24
    %v561 = vpop.permute.xlu0 %560
    %v562 = vadd.f32 %v559, %v561
    %563 = vrot.lane.b32.xlu0 %v553, 32
    %v564 = vpop.permute.xlu0 %563
    %v565 = vadd.f32 %v562, %v564
    %566 = vrot.lane.b32.xlu0 %v553, 40
    %v567 = vpop.permute.xlu0 %566
    %v568 = vadd.f32 %v565, %v567
    %569 = vrot.lane.b32.xlu0 %v553, 48
    %v570 = vpop.permute.xlu0 %569
    %v571 = vadd.f32 %v568, %v570
    %572 = vrot.lane.b32.xlu0 %v553, 56
    %v573 = vpop.permute.xlu0 %572
    %v574 = vadd.f32 %v571, %v573
    %575 = vrot.lane.b32.xlu0 %v553, 64
    %v576 = vpop.permute.xlu0 %575
    %v577 = vadd.f32 %v574, %v576
    %578 = vrot.lane.b32.xlu0 %v553, 72
    %v579 = vpop.permute.xlu0 %578
    %v580 = vadd.f32 %v577, %v579
    %581 = vrot.lane.b32.xlu0 %v553, 80
    %v582 = vpop.permute.xlu0 %581
    %v583 = vadd.f32 %v580, %v582
    %584 = vrot.lane.b32.xlu0 %v553, 88
    %v585 = vpop.permute.xlu0 %584
    %v586 = vadd.f32 %v583, %v585
    %587 = vrot.lane.b32.xlu0 %v553, 96
    %v588 = vpop.permute.xlu0 %587
    %v589 = vadd.f32 %v586, %v588
    %590 = vrot.lane.b32.xlu0 %v553, 104
    %v591 = vpop.permute.xlu0 %590
    %v592 = vadd.f32 %v589, %v591
    %593 = vrot.lane.b32.xlu0 %v553, 112
    %v594 = vpop.permute.xlu0 %593
    %v595 = vadd.f32 %v592, %v594
    %596 = vrot.lane.b32.xlu0 %v553, 120
    %v597 = vpop.permute.xlu0 %596
    %v598 = vadd.f32 %v595, %v597
    %v599 = vmul.f32 %v598, 0.001953125
    %v600 = vld [vmem:[%s3] sm:$0x1]
    %v601 = vadd.f32 %v599, 1e-05
    %v602 = vrsqrt.pop %v601
    %v603 = vmul.f32 %v600, %v602
    %v605 = vlaneseq
    %v606 = vshrl.u32 %v605, 7
    %v607 = vsub.s32 0, %v606
    %v608 = vrot.slane %v603, %v607
    %v610 = vmul.f32 %v530, %v608
    %v611 = vmul.f32 %v531, %v608
    %v612 = vld [vmem:[%s4] sm:$0x1]
    %v614 = vlaneseq
    %v615 = vshrl.u32 %v614, 7
    %v616 = vsub.s32 0, %v615
    %v617 = vrot.slane %v612, %v616
    %v619 = vadd.f32 %v610, %v617
    %v620 = vadd.f32 %v611, %v617
    %v621 = vmax.f32 %v619, 0.0
    %v622 = vmax.f32 %v620, 0.0
    %v623 = vpack.c.bf16 %v622, %v621
    %v624 = vmul.f32 %v532, %v608
    %v625 = vmul.f32 %v533, %v608
    %v626 = vadd.f32 %v624, %v617
    %v627 = vadd.f32 %v625, %v617
    %v628 = vmax.f32 %v626, 0.0
    %v629 = vmax.f32 %v627, 0.0
    %v630 = vpack.c.bf16 %v629, %v628
    %v631 = vld [vmem:[#allocation7] sm:$0xf]
    %v632 = vld [vmem:[#allocation7 + $0x4] sm:$0xf]
    %v633 = vld [vmem:[#allocation7 + $0x8] sm:$0xf]
    %v634 = vld [vmem:[#allocation7 + $0xc] sm:$0xf]
    %v635 = vld [vmem:[#allocation7 + $0x10] sm:$0xf]
    %v636 = vld [vmem:[#allocation7 + $0x14] sm:$0xf]
    %v637 = vld [vmem:[#allocation7 + $0x18] sm:$0xf]
    %v638 = vld [vmem:[#allocation7 + $0x1c] sm:$0xf]
    %v639 = vld [vmem:[#allocation7 + $0x20] sm:$0xf]
    %v640 = vld [vmem:[#allocation7 + $0x24] sm:$0xf]
    %v641 = vld [vmem:[#allocation7 + $0x28] sm:$0xf]
    %v642 = vld [vmem:[#allocation7 + $0x2c] sm:$0xf]
    %v643 = vld [vmem:[#allocation7 + $0x30] sm:$0xf]
    %v644 = vld [vmem:[#allocation7 + $0x34] sm:$0xf]
    %v645 = vld [vmem:[#allocation7 + $0x38] sm:$0xf]
    %v646 = vld [vmem:[#allocation7 + $0x3c] sm:$0xf]
    %v663 = vunpack.c.l.b16 %v631
    %v664 = vunpack.c.l.b16 %v632
    %v665 = vunpack.c.l.b16 %v633
    %v666 = vunpack.c.l.b16 %v634
    %v667 = vunpack.c.l.b16 %v635
    %v668 = vunpack.c.l.b16 %v636
    %v669 = vunpack.c.l.b16 %v637
    %v670 = vunpack.c.l.b16 %v638
    %v671 = vunpack.c.l.b16 %v639
    %v672 = vunpack.c.l.b16 %v640
    %v673 = vunpack.c.l.b16 %v641
    %v674 = vunpack.c.l.b16 %v642
    %v675 = vunpack.c.l.b16 %v643
    %v676 = vunpack.c.l.b16 %v644
    %v677 = vunpack.c.l.b16 %v645
    %v678 = vunpack.c.l.b16 %v646
    %v679 = vpack.c.b16 %v664, %v663
    %v680 = vpack.c.b16 %v666, %v665
    %v681 = vpack.c.b16 %v668, %v667
    %v682 = vpack.c.b16 %v670, %v669
    %v683 = vpack.c.b16 %v672, %v671
    %v684 = vpack.c.b16 %v674, %v673
    %v685 = vpack.c.b16 %v676, %v675
    %v686 = vpack.c.b16 %v678, %v677
    %695 = vmatprep.subr.bf16.mxu0 0
    %696 = vmatpush1.bf16.msra.mxu0 %v686
    %697 = vmatprep.subr.bf16.mxu0 0
    %698 = vmatpush1.bf16.msra.mxu0 %v685
    %699 = vmatprep.subr.bf16.mxu0 0
    %700 = vmatpush1.bf16.msra.mxu0 %v684
    %701 = vmatprep.subr.bf16.mxu0 0
    %702 = vmatpush1.bf16.msra.mxu0 %v683
    %703 = vmatprep.subr.bf16.mxu0 0
    %704 = vmatpush1.bf16.msra.mxu0 %v682
    %705 = vmatprep.subr.bf16.mxu0 0
    %706 = vmatpush1.bf16.msra.mxu0 %v681
    %707 = vmatprep.subr.bf16.mxu0 0
    %708 = vmatpush1.bf16.msra.mxu0 %v680
    %709 = vmatprep.subr.bf16.mxu0 0
    %710 = vmatpush1.bf16.msra.mxu0 %v679
    %711 = vmatprep.subr.bf16.mxu0 0
    %712 = vmatpush2.bf16.msra.mxu0 0
    %713 = vmatprep.subr.bf16.mxu0 0
    %714 = vmatpush2.bf16.msra.mxu0 0
    %715 = vmatprep.subr.bf16.mxu0 0
    %716 = vmatpush2.bf16.msra.mxu0 0
    %717 = vmatprep.subr.bf16.mxu0 0
    %718 = vmatpush2.bf16.msra.mxu0 0
    %719 = vmatprep.subr.bf16.mxu0 0
    %720 = vmatpush2.bf16.msra.mxu0 0
    %721 = vmatprep.subr.bf16.mxu0 0
    %722 = vmatpush2.bf16.msra.mxu0 0
    %723 = vmatprep.subr.bf16.mxu0 0
    %724 = vmatpush2.bf16.msra.mxu0 0
    %725 = vmatprep.subr.bf16.mxu0 0
    %726 = vmatpush2.bf16.msra.mxu0 0
    %727 = vmatprep.mubr.bf16.mxu0 0
    %728 = vmatmul.mubr.bf16.gmra.mxu0 %v623
    %v729 = vpop.f32.mrf.mxu0
    %v730 = vadd.f32 0.0, %v729
    %v731 = vpop.f32.mrf.mxu0
    %v732 = vpop.f32.mrf.mxu0
    %v733 = vadd.f32 0.0, %v732
    %v734 = vpop.f32.mrf.mxu0
    %735 = vdwg.mxu0
    %s736 = scalar_lea.vmem [#allocation7], 64
    %v737 = vld [vmem:[%s736] sm:$0xf]
    %v738 = vld [vmem:[%s736 + $0x4] sm:$0xf]
    %v739 = vld [vmem:[%s736 + $0x8] sm:$0xf]
    %v740 = vld [vmem:[%s736 + $0xc] sm:$0xf]
    %v741 = vld [vmem:[%s736 + $0x10] sm:$0xf]
    %v742 = vld [vmem:[%s736 + $0x14] sm:$0xf]
    %v743 = vld [vmem:[%s736 + $0x18] sm:$0xf]
    %v744 = vld [vmem:[%s736 + $0x1c] sm:$0xf]
    %v745 = vld [vmem:[%s736 + $0x20] sm:$0xf]
    %v746 = vld [vmem:[%s736 + $0x24] sm:$0xf]
    %v747 = vld [vmem:[%s736 + $0x28] sm:$0xf]
    %v748 = vld [vmem:[%s736 + $0x2c] sm:$0xf]
    %v749 = vld [vmem:[%s736 + $0x30] sm:$0xf]
    %v750 = vld [vmem:[%s736 + $0x34] sm:$0xf]
    %v751 = vld [vmem:[%s736 + $0x38] sm:$0xf]
    %v752 = vld [vmem:[%s736 + $0x3c] sm:$0xf]
    %s753 = scalar_lea.vmem [#allocation7], 128
    %v754 = vld [vmem:[%s753] sm:$0xf]
    %v755 = vld [vmem:[%s753 + $0x4] sm:$0xf]
    %v756 = vld [vmem:[%s753 + $0x8] sm:$0xf]
    %v757 = vld [vmem:[%s753 + $0xc] sm:$0xf]
    %v758 = vld [vmem:[%s753 + $0x10] sm:$0xf]
    %v759 = vld [vmem:[%s753 + $0x14] sm:$0xf]
    %v760 = vld [vmem:[%s753 + $0x18] sm:$0xf]
    %v761 = vld [vmem:[%s753 + $0x1c] sm:$0xf]
    %v762 = vld [vmem:[%s753 + $0x20] sm:$0xf]
    %v763 = vld [vmem:[%s753 + $0x24] sm:$0xf]
    %v764 = vld [vmem:[%s753 + $0x28] sm:$0xf]
    %v765 = vld [vmem:[%s753 + $0x2c] sm:$0xf]
    %v766 = vld [vmem:[%s753 + $0x30] sm:$0xf]
    %v767 = vld [vmem:[%s753 + $0x34] sm:$0xf]
    %v768 = vld [vmem:[%s753 + $0x38] sm:$0xf]
    %v769 = vld [vmem:[%s753 + $0x3c] sm:$0xf]
    %v786 = vunpack.c.l.b16 %v754
    %v787 = vunpack.c.l.b16 %v755
    %v788 = vunpack.c.l.b16 %v756
    %v789 = vunpack.c.l.b16 %v757
    %v790 = vunpack.c.l.b16 %v758
    %v791 = vunpack.c.l.b16 %v759
    %v792 = vunpack.c.l.b16 %v760
    %v793 = vunpack.c.l.b16 %v761
    %v794 = vunpack.c.l.b16 %v762
    %v795 = vunpack.c.l.b16 %v763
    %v796 = vunpack.c.l.b16 %v764
    %v797 = vunpack.c.l.b16 %v765
    %v798 = vunpack.c.l.b16 %v766
    %v799 = vunpack.c.l.b16 %v767
    %v800 = vunpack.c.l.b16 %v768
    %v801 = vunpack.c.l.b16 %v769
    %v802 = vpack.c.b16 %v787, %v786
    %v803 = vpack.c.b16 %v789, %v788
    %v804 = vpack.c.b16 %v791, %v790
    %v805 = vpack.c.b16 %v793, %v792
    %v806 = vpack.c.b16 %v795, %v794
    %v807 = vpack.c.b16 %v797, %v796
    %v808 = vpack.c.b16 %v799, %v798
    %v809 = vpack.c.b16 %v801, %v800
    %818 = vmatprep.subr.bf16.mxu0 0
    %819 = vmatpush1.bf16.msra.mxu0 %v809
    %820 = vmatprep.subr.bf16.mxu0 0
    %821 = vmatpush1.bf16.msra.mxu0 %v808
    %822 = vmatprep.subr.bf16.mxu0 0
    %823 = vmatpush1.bf16.msra.mxu0 %v807
    %824 = vmatprep.subr.bf16.mxu0 0
    %825 = vmatpush1.bf16.msra.mxu0 %v806
    %826 = vmatprep.subr.bf16.mxu0 0
    %827 = vmatpush1.bf16.msra.mxu0 %v805
    %828 = vmatprep.subr.bf16.mxu0 0
    %829 = vmatpush1.bf16.msra.mxu0 %v804
    %830 = vmatprep.subr.bf16.mxu0 0
    %831 = vmatpush1.bf16.msra.mxu0 %v803
    %832 = vmatprep.subr.bf16.mxu0 0
    %833 = vmatpush1.bf16.msra.mxu0 %v802
    %834 = vmatprep.subr.bf16.mxu0 0
    %835 = vmatpush2.bf16.msra.mxu0 0
    %836 = vmatprep.subr.bf16.mxu0 0
    %837 = vmatpush2.bf16.msra.mxu0 0
    %838 = vmatprep.subr.bf16.mxu0 0
    %839 = vmatpush2.bf16.msra.mxu0 0
    %840 = vmatprep.subr.bf16.mxu0 0
    %841 = vmatpush2.bf16.msra.mxu0 0
    %842 = vmatprep.subr.bf16.mxu0 0
    %843 = vmatpush2.bf16.msra.mxu0 0
    %844 = vmatprep.subr.bf16.mxu0 0
    %845 = vmatpush2.bf16.msra.mxu0 0
    %846 = vmatprep.subr.bf16.mxu0 0
    %847 = vmatpush2.bf16.msra.mxu0 0
    %848 = vmatprep.subr.bf16.mxu0 0
    %849 = vmatpush2.bf16.msra.mxu0 0
    %850 = vmatprep.mubr.bf16.mxu0 0
    %851 = vmatmul.mubr.bf16.gmra.mxu0 %v623
    %v852 = vpop.f32.mrf.mxu0
    %v853 = vadd.f32 0.0, %v852
    %v854 = vpop.f32.mrf.mxu0
    %v855 = vpop.f32.mrf.mxu0
    %v856 = vadd.f32 0.0, %v855
    %v857 = vpop.f32.mrf.mxu0
    %858 = vdwg.mxu0
    %v859 = vrot.slane %v730, 7
    %v860 = vrot.slane %v733, 7
    %v861 = vsel %vm239, %v859, %v860
    %v862 = vsel %vm239, %v860, %v859
    %v863 = vsel %vm235, 0.0, %v862
    %v864 = vsel %vm236, 0.0, %v861
    %v881 = vunpack.c.l.b16 %v737
    %v882 = vunpack.c.l.b16 %v738
    %v883 = vunpack.c.l.b16 %v739
    %v884 = vunpack.c.l.b16 %v740
    %v885 = vunpack.c.l.b16 %v741
    %v886 = vunpack.c.l.b16 %v742
    %v887 = vunpack.c.l.b16 %v743
    %v888 = vunpack.c.l.b16 %v744
    %v889 = vunpack.c.l.b16 %v745
    %v890 = vunpack.c.l.b16 %v746
    %v891 = vunpack.c.l.b16 %v747
    %v892 = vunpack.c.l.b16 %v748
    %v893 = vunpack.c.l.b16 %v749
    %v894 = vunpack.c.l.b16 %v750
    %v895 = vunpack.c.l.b16 %v751
    %v896 = vunpack.c.l.b16 %v752
    %v897 = vpack.c.b16 %v882, %v881
    %v898 = vpack.c.b16 %v884, %v883
    %v899 = vpack.c.b16 %v886, %v885
    %v900 = vpack.c.b16 %v888, %v887
    %v901 = vpack.c.b16 %v890, %v889
    %v902 = vpack.c.b16 %v892, %v891
    %v903 = vpack.c.b16 %v894, %v893
    %v904 = vpack.c.b16 %v896, %v895
    %913 = vmatprep.subr.bf16.mxu0 0
    %914 = vmatpush1.bf16.msra.mxu0 %v904
    %915 = vmatprep.subr.bf16.mxu0 0
    %916 = vmatpush1.bf16.msra.mxu0 %v903
    %917 = vmatprep.subr.bf16.mxu0 0
    %918 = vmatpush1.bf16.msra.mxu0 %v902
    %919 = vmatprep.subr.bf16.mxu0 0
    %920 = vmatpush1.bf16.msra.mxu0 %v901
    %921 = vmatprep.subr.bf16.mxu0 0
    %922 = vmatpush1.bf16.msra.mxu0 %v900
    %923 = vmatprep.subr.bf16.mxu0 0
    %924 = vmatpush1.bf16.msra.mxu0 %v899
    %925 = vmatprep.subr.bf16.mxu0 0
    %926 = vmatpush1.bf16.msra.mxu0 %v898
    %927 = vmatprep.subr.bf16.mxu0 0
    %928 = vmatpush1.bf16.msra.mxu0 %v897
    %929 = vmatprep.subr.bf16.mxu0 0
    %930 = vmatpush2.bf16.msra.mxu0 0
    %931 = vmatprep.subr.bf16.mxu0 0
    %932 = vmatpush2.bf16.msra.mxu0 0
    %933 = vmatprep.subr.bf16.mxu0 0
    %934 = vmatpush2.bf16.msra.mxu0 0
    %935 = vmatprep.subr.bf16.mxu0 0
    %936 = vmatpush2.bf16.msra.mxu0 0
    %937 = vmatprep.subr.bf16.mxu0 0
    %938 = vmatpush2.bf16.msra.mxu0 0
    %939 = vmatprep.subr.bf16.mxu0 0
    %940 = vmatpush2.bf16.msra.mxu0 0
    %941 = vmatprep.subr.bf16.mxu0 0
    %942 = vmatpush2.bf16.msra.mxu0 0
    %943 = vmatprep.subr.bf16.mxu0 0
    %944 = vmatpush2.bf16.msra.mxu0 0
    %945 = vmatprep.mubr.bf16.mxu0 0
    %946 = vmatmul.mubr.bf16.gmra.mxu0 %v623
    %v947 = vpop.f32.mrf.mxu0
    %v948 = vadd.f32 %v863, %v947
    %v949 = vpop.f32.mrf.mxu0
    %v950 = vpop.f32.mrf.mxu0
    %v951 = vadd.f32 %v864, %v950
    %v952 = vpop.f32.mrf.mxu0
    %953 = vdwg.mxu0
    %v954 = vrot.slane %v853, 1
    %v955 = vrot.slane %v856, 1
    %v956 = vsel %vm313, %v954, %v955
    %v957 = vsel %vm313, %v955, %v954
    %v958 = vsel %vm309, 0.0, %v956
    %v959 = vsel %vm310, 0.0, %v957
    %v960 = vadd.f32 %v948, %v958
    %v961 = vadd.f32 %v951, %v959
    %962 = vmatprep.subr.bf16.mxu0 0
    %963 = vmatpush1.bf16.msra.mxu0 %v686
    %964 = vmatprep.subr.bf16.mxu0 0
    %965 = vmatpush1.bf16.msra.mxu0 %v685
    %966 = vmatprep.subr.bf16.mxu0 0
    %967 = vmatpush1.bf16.msra.mxu0 %v684
    %968 = vmatprep.subr.bf16.mxu0 0
    %969 = vmatpush1.bf16.msra.mxu0 %v683
    %970 = vmatprep.subr.bf16.mxu0 0
    %971 = vmatpush1.bf16.msra.mxu0 %v682
    %972 = vmatprep.subr.bf16.mxu0 0
    %973 = vmatpush1.bf16.msra.mxu0 %v681
    %974 = vmatprep.subr.bf16.mxu0 0
    %975 = vmatpush1.bf16.msra.mxu0 %v680
    %976 = vmatprep.subr.bf16.mxu0 0
    %977 = vmatpush1.bf16.msra.mxu0 %v679
    %978 = vmatprep.subr.bf16.mxu0 0
    %979 = vmatpush2.bf16.msra.mxu0 0
    %980 = vmatprep.subr.bf16.mxu0 0
    %981 = vmatpush2.bf16.msra.mxu0 0
    %982 = vmatprep.subr.bf16.mxu0 0
    %983 = vmatpush2.bf16.msra.mxu0 0
    %984 = vmatprep.subr.bf16.mxu0 0
    %985 = vmatpush2.bf16.msra.mxu0 0
    %986 = vmatprep.subr.bf16.mxu0 0
    %987 = vmatpush2.bf16.msra.mxu0 0
    %988 = vmatprep.subr.bf16.mxu0 0
    %989 = vmatpush2.bf16.msra.mxu0 0
    %990 = vmatprep.subr.bf16.mxu0 0
    %991 = vmatpush2.bf16.msra.mxu0 0
    %992 = vmatprep.subr.bf16.mxu0 0
    %993 = vmatpush2.bf16.msra.mxu0 0
    %994 = vmatprep.mubr.bf16.mxu0 0
    %995 = vmatmul.mubr.bf16.gmra.mxu0 %v630
    %v996 = vpop.f32.mrf.mxu0
    %v997 = vadd.f32 0.0, %v996
    %v998 = vpop.f32.mrf.mxu0
    %v999 = vpop.f32.mrf.mxu0
    %v1000 = vadd.f32 0.0, %v999
    %v1001 = vpop.f32.mrf.mxu0
    %1002 = vdwg.mxu0
    %1003 = vmatprep.subr.bf16.mxu0 0
    %1004 = vmatpush1.bf16.msra.mxu0 %v809
    %1005 = vmatprep.subr.bf16.mxu0 0
    %1006 = vmatpush1.bf16.msra.mxu0 %v808
    %1007 = vmatprep.subr.bf16.mxu0 0
    %1008 = vmatpush1.bf16.msra.mxu0 %v807
    %1009 = vmatprep.subr.bf16.mxu0 0
    %1010 = vmatpush1.bf16.msra.mxu0 %v806
    %1011 = vmatprep.subr.bf16.mxu0 0
    %1012 = vmatpush1.bf16.msra.mxu0 %v805
    %1013 = vmatprep.subr.bf16.mxu0 0
    %1014 = vmatpush1.bf16.msra.mxu0 %v804
    %1015 = vmatprep.subr.bf16.mxu0 0
    %1016 = vmatpush1.bf16.msra.mxu0 %v803
    %1017 = vmatprep.subr.bf16.mxu0 0
    %1018 = vmatpush1.bf16.msra.mxu0 %v802
    %1019 = vmatprep.subr.bf16.mxu0 0
    %1020 = vmatpush2.bf16.msra.mxu0 0
    %1021 = vmatprep.subr.bf16.mxu0 0
    %1022 = vmatpush2.bf16.msra.mxu0 0
    %1023 = vmatprep.subr.bf16.mxu0 0
    %1024 = vmatpush2.bf16.msra.mxu0 0
    %1025 = vmatprep.subr.bf16.mxu0 0
    %1026 = vmatpush2.bf16.msra.mxu0 0
    %1027 = vmatprep.subr.bf16.mxu0 0
    %1028 = vmatpush2.bf16.msra.mxu0 0
    %1029 = vmatprep.subr.bf16.mxu0 0
    %1030 = vmatpush2.bf16.msra.mxu0 0
    %1031 = vmatprep.subr.bf16.mxu0 0
    %1032 = vmatpush2.bf16.msra.mxu0 0
    %1033 = vmatprep.subr.bf16.mxu0 0
    %1034 = vmatpush2.bf16.msra.mxu0 0
    %1035 = vmatprep.mubr.bf16.mxu0 0
    %1036 = vmatmul.mubr.bf16.gmra.mxu0 %v630
    %v1037 = vpop.f32.mrf.mxu0
    %v1038 = vadd.f32 0.0, %v1037
    %v1039 = vpop.f32.mrf.mxu0
    %v1040 = vpop.f32.mrf.mxu0
    %v1041 = vadd.f32 0.0, %v1040
    %v1042 = vpop.f32.mrf.mxu0
    %1043 = vdwg.mxu0
    %v1044 = vrot.slane %v997, 7
    %v1045 = vrot.slane %v1000, 7
    %v1046 = vsel %vm239, %v1044, %v1045
    %v1047 = vsel %vm239, %v1045, %v1044
    %v1048 = vsel %vm235, 0.0, %v1047
    %v1049 = vsel %vm236, 0.0, %v1046
    %1050 = vmatprep.subr.bf16.mxu0 0
    %1051 = vmatpush1.bf16.msra.mxu0 %v904
    %1052 = vmatprep.subr.bf16.mxu0 0
    %1053 = vmatpush1.bf16.msra.mxu0 %v903
    %1054 = vmatprep.subr.bf16.mxu0 0
    %1055 = vmatpush1.bf16.msra.mxu0 %v902
    %1056 = vmatprep.subr.bf16.mxu0 0
    %1057 = vmatpush1.bf16.msra.mxu0 %v901
    %1058 = vmatprep.subr.bf16.mxu0 0
    %1059 = vmatpush1.bf16.msra.mxu0 %v900
    %1060 = vmatprep.subr.bf16.mxu0 0
    %1061 = vmatpush1.bf16.msra.mxu0 %v899
    %1062 = vmatprep.subr.bf16.mxu0 0
    %1063 = vmatpush1.bf16.msra.mxu0 %v898
    %1064 = vmatprep.subr.bf16.mxu0 0
    %1065 = vmatpush1.bf16.msra.mxu0 %v897
    %1066 = vmatprep.subr.bf16.mxu0 0
    %1067 = vmatpush2.bf16.msra.mxu0 0
    %1068 = vmatprep.subr.bf16.mxu0 0
    %1069 = vmatpush2.bf16.msra.mxu0 0
    %1070 = vmatprep.subr.bf16.mxu0 0
    %1071 = vmatpush2.bf16.msra.mxu0 0
    %1072 = vmatprep.subr.bf16.mxu0 0
    %1073 = vmatpush2.bf16.msra.mxu0 0
    %1074 = vmatprep.subr.bf16.mxu0 0
    %1075 = vmatpush2.bf16.msra.mxu0 0
    %1076 = vmatprep.subr.bf16.mxu0 0
    %1077 = vmatpush2.bf16.msra.mxu0 0
    %1078 = vmatprep.subr.bf16.mxu0 0
    %1079 = vmatpush2.bf16.msra.mxu0 0
    %1080 = vmatprep.subr.bf16.mxu0 0
    %1081 = vmatpush2.bf16.msra.mxu0 0
    %1082 = vmatprep.mubr.bf16.mxu0 0
    %1083 = vmatmul.mubr.bf16.gmra.mxu0 %v630
    %v1084 = vpop.f32.mrf.mxu0
    %v1085 = vadd.f32 %v1048, %v1084
    %v1086 = vpop.f32.mrf.mxu0
    %v1087 = vpop.f32.mrf.mxu0
    %v1088 = vadd.f32 %v1049, %v1087
    %v1089 = vpop.f32.mrf.mxu0
    %1090 = vdwg.mxu0
    %v1091 = vrot.slane %v1038, 1
    %v1092 = vrot.slane %v1041, 1
    %v1093 = vsel %vm313, %v1091, %v1092
    %v1094 = vsel %vm313, %v1092, %v1091
    %v1095 = vsel %vm309, 0.0, %v1093
    %v1096 = vsel %vm310, 0.0, %v1094
    %v1097 = vadd.f32 %v1085, %v1095
    %v1098 = vadd.f32 %v1088, %v1096
    %v1099 = vadd.f32 %v960, %v961
    %v1100 = vrot.slane %v1099, 4
    %v1101 = vadd.f32 %v1099, %v1100
    %v1102 = vrot.slane %v1101, 2
    %v1103 = vadd.f32 %v1101, %v1102
    %v1104 = vrot.slane %v1103, 1
    %v1105 = vadd.f32 %v1103, %v1104
    %v1106 = vadd.f32 %v1105, 0.0
    %v1107 = vadd.f32 %v1097, %v1098
    %v1108 = vrot.slane %v1107, 4
    %v1109 = vadd.f32 %v1107, %v1108
    %v1110 = vrot.slane %v1109, 2
    %v1111 = vadd.f32 %v1109, %v1110
    %v1112 = vrot.slane %v1111, 1
    %v1113 = vadd.f32 %v1111, %v1112
    %v1114 = vadd.f32 %v1106, %v1113
    %1115 = vrot.lane.b32.xlu0 %v1114, 8
    %v1116 = vpop.permute.xlu0 %1115
    %v1117 = vadd.f32 %v1114, %v1116
    %1118 = vrot.lane.b32.xlu0 %v1114, 16
    %v1119 = vpop.permute.xlu0 %1118
    %v1120 = vadd.f32 %v1117, %v1119
    %1121 = vrot.lane.b32.xlu0 %v1114, 24
    %v1122 = vpop.permute.xlu0 %1121
    %v1123 = vadd.f32 %v1120, %v1122
    %1124 = vrot.lane.b32.xlu0 %v1114, 32
    %v1125 = vpop.permute.xlu0 %1124
    %v1126 = vadd.f32 %v1123, %v1125
    %1127 = vrot.lane.b32.xlu0 %v1114, 40
    %v1128 = vpop.permute.xlu0 %1127
    %v1129 = vadd.f32 %v1126, %v1128
    %1130 = vrot.lane.b32.xlu0 %v1114, 48
    %v1131 = vpop.permute.xlu0 %1130
    %v1132 = vadd.f32 %v1129, %v1131
    %1133 = vrot.lane.b32.xlu0 %v1114, 56
    %v1134 = vpop.permute.xlu0 %1133
    %v1135 = vadd.f32 %v1132, %v1134
    %1136 = vrot.lane.b32.xlu0 %v1114, 64
    %v1137 = vpop.permute.xlu0 %1136
    %v1138 = vadd.f32 %v1135, %v1137
    %1139 = vrot.lane.b32.xlu0 %v1114, 72
    %v1140 = vpop.permute.xlu0 %1139
    %v1141 = vadd.f32 %v1138, %v1140
    %1142 = vrot.lane.b32.xlu0 %v1114, 80
    %v1143 = vpop.permute.xlu0 %1142
    %v1144 = vadd.f32 %v1141, %v1143
    %1145 = vrot.lane.b32.xlu0 %v1114, 88
    %v1146 = vpop.permute.xlu0 %1145
    %v1147 = vadd.f32 %v1144, %v1146
    %1148 = vrot.lane.b32.xlu0 %v1114, 96
    %v1149 = vpop.permute.xlu0 %1148
    %v1150 = vadd.f32 %v1147, %v1149
    %1151 = vrot.lane.b32.xlu0 %v1114, 104
    %v1152 = vpop.permute.xlu0 %1151
    %v1153 = vadd.f32 %v1150, %v1152
    %1154 = vrot.lane.b32.xlu0 %v1114, 112
    %v1155 = vpop.permute.xlu0 %1154
    %v1156 = vadd.f32 %v1153, %v1155
    %1157 = vrot.lane.b32.xlu0 %v1114, 120
    %v1158 = vpop.permute.xlu0 %1157
    %v1159 = vadd.f32 %v1156, %v1158
    %v1160 = vmul.f32 %v1159, 0.001953125
    %v1161 = vlaneseq
    %v1162 = vshrl.u32 %v1161, 7
    %v1163 = vsub.s32 0, %v1162
    %v1164 = vrot.slane %v1160, %v1163
    %v1165 = vsub.f32 %v960, %v1164
    %v1166 = vsub.f32 %v961, %v1164
    %v1167 = vsub.f32 %v1097, %v1164
    %v1168 = vsub.f32 %v1098, %v1164
    %v1169 = vmul.f32 %v1165, %v1165
    %v1170 = vmul.f32 %v1166, %v1166
    %v1171 = vadd.f32 %v1169, %v1170
    %v1172 = vrot.slane %v1171, 4
    %v1173 = vadd.f32 %v1171, %v1172
    %v1174 = vrot.slane %v1173, 2
    %v1175 = vadd.f32 %v1173, %v1174
    %v1176 = vrot.slane %v1175, 1
    %v1177 = vadd.f32 %v1175, %v1176
    %v1178 = vadd.f32 %v1177, 0.0
    %v1179 = vmul.f32 %v1167, %v1167
    %v1180 = vmul.f32 %v1168, %v1168
    %v1181 = vadd.f32 %v1179, %v1180
    %v1182 = vrot.slane %v1181, 4
    %v1183 = vadd.f32 %v1181, %v1182
    %v1184 = vrot.slane %v1183, 2
    %v1185 = vadd.f32 %v1183, %v1184
    %v1186 = vrot.slane %v1185, 1
    %v1187 = vadd.f32 %v1185, %v1186
    %v1188 = vadd.f32 %v1178, %v1187
    %1189 = vrot.lane.b32.xlu0 %v1188, 8
    %v1190 = vpop.permute.xlu0 %1189
    %v1191 = vadd.f32 %v1188, %v1190
    %1192 = vrot.lane.b32.xlu0 %v1188, 16
    %v1193 = vpop.permute.xlu0 %1192
    %v1194 = vadd.f32 %v1191, %v1193
    %1195 = vrot.lane.b32.xlu0 %v1188, 24
    %v1196 = vpop.permute.xlu0 %1195
    %v1197 = vadd.f32 %v1194, %v1196
    %1198 = vrot.lane.b32.xlu0 %v1188, 32
    %v1199 = vpop.permute.xlu0 %1198
    %v1200 = vadd.f32 %v1197, %v1199
    %1201 = vrot.lane.b32.xlu0 %v1188, 40
    %v1202 = vpop.permute.xlu0 %1201
    %v1203 = vadd.f32 %v1200, %v1202
    %1204 = vrot.lane.b32.xlu0 %v1188, 48
    %v1205 = vpop.permute.xlu0 %1204
    %v1206 = vadd.f32 %v1203, %v1205
    %1207 = vrot.lane.b32.xlu0 %v1188, 56
    %v1208 = vpop.permute.xlu0 %1207
    %v1209 = vadd.f32 %v1206, %v1208
    %1210 = vrot.lane.b32.xlu0 %v1188, 64
    %v1211 = vpop.permute.xlu0 %1210
    %v1212 = vadd.f32 %v1209, %v1211
    %1213 = vrot.lane.b32.xlu0 %v1188, 72
    %v1214 = vpop.permute.xlu0 %1213
    %v1215 = vadd.f32 %v1212, %v1214
    %1216 = vrot.lane.b32.xlu0 %v1188, 80
    %v1217 = vpop.permute.xlu0 %1216
    %v1218 = vadd.f32 %v1215, %v1217
    %1219 = vrot.lane.b32.xlu0 %v1188, 88
    %v1220 = vpop.permute.xlu0 %1219
    %v1221 = vadd.f32 %v1218, %v1220
    %1222 = vrot.lane.b32.xlu0 %v1188, 96
    %v1223 = vpop.permute.xlu0 %1222
    %v1224 = vadd.f32 %v1221, %v1223
    %1225 = vrot.lane.b32.xlu0 %v1188, 104
    %v1226 = vpop.permute.xlu0 %1225
    %v1227 = vadd.f32 %v1224, %v1226
    %1228 = vrot.lane.b32.xlu0 %v1188, 112
    %v1229 = vpop.permute.xlu0 %1228
    %v1230 = vadd.f32 %v1227, %v1229
    %1231 = vrot.lane.b32.xlu0 %v1188, 120
    %v1232 = vpop.permute.xlu0 %1231
    %v1233 = vadd.f32 %v1230, %v1232
    %v1234 = vmul.f32 %v1233, 0.001953125
    %v1235 = vld [vmem:[%s5] sm:$0x1]
    %v1236 = vadd.f32 %v1234, 1e-05
    %v1237 = vrsqrt.pop %v1236
    %v1238 = vmul.f32 %v1235, %v1237
    %v1240 = vlaneseq
    %v1241 = vshrl.u32 %v1240, 7
    %v1242 = vsub.s32 0, %v1241
    %v1243 = vrot.slane %v1238, %v1242
    %v1245 = vmul.f32 %v1165, %v1243
    %v1246 = vmul.f32 %v1166, %v1243
    %v1247 = vld [vmem:[%s6] sm:$0x1]
    %v1249 = vlaneseq
    %v1250 = vshrl.u32 %v1249, 7
    %v1251 = vsub.s32 0, %v1250
    %v1252 = vrot.slane %v1247, %v1251
    %v1254 = vadd.f32 %v1245, %v1252
    %v1255 = vadd.f32 %v1246, %v1252
    %v1256 = vmax.f32 %v1254, 0.0
    %v1257 = vmax.f32 %v1255, 0.0
    %1258 = vst [vmem:[#allocation8] sm:$0xff] %v1256
    %1259 = vst [vmem:[#allocation8 + $0x8] sm:$0xff] %v1257
    %v1260 = vmul.f32 %v1167, %v1243
    %v1261 = vmul.f32 %v1168, %v1243
    %v1262 = vld [vmem:[%s6] sm:$0x1]
    %v1264 = vlaneseq
    %v1265 = vshrl.u32 %v1264, 7
    %v1266 = vsub.s32 0, %v1265
    %v1267 = vrot.slane %v1262, %v1266
    %v1269 = vadd.f32 %v1260, %v1267
    %v1270 = vadd.f32 %v1261, %v1267
    %v1271 = vmax.f32 %v1269, 0.0
    %v1272 = vmax.f32 %v1270, 0.0
    %s1273 = scalar_lea.vmem [#allocation8], 16
    %1274 = vst [vmem:[%s1273] sm:$0xff] %v1271
    %1275 = vst [vmem:[%s1273 + $0x8] sm:$0xff] %v1272
    // Predicated region
    $region42: #{tpu_custom_call.1} parent=1 // pred_check
      _
    $region43: #{tpu_custom_call.1} parent=1 // pred_check_branch
      %1277 = sbr.rel (0) target = $region45
    $region44: #{tpu_custom_call.1} parent=1 // pred_region
      %s1279 = ssub.s32 512, 512
      %1280 = vsyncadd [#allocation4], %s1279
      %s1281 = sshll.u32 [#allocation8], 4
      %s1282 = int_to_ptr.vmem [resolvable:$true] %s1281
      %1287 = dma.vmem_to_hbm [thread:$0]  %s1282, 512, %s7, [#allocation4], 128, 128, 8
    $region45: #{tpu_custom_call.1} parent=1 // pred_fallthru
      _
    // Predicated region
    $region46: #{tpu_custom_call.1} parent=1 // pred_check
      _
    $region47: #{tpu_custom_call.1} parent=1 // pred_check_branch
      %1289 = sbr.rel (0) target = $region49
    $region48: #{tpu_custom_call.1} parent=1 // pred_region
      %1290 = dma.done [#allocation4], 512
    $region49: #{tpu_custom_call.1} parent=1 // pred_fallthru
      _
    %1291 = vsyncpa [#allocation3], 1
    %1292 = vsyncpa [#allocation6], 1
    %1293 = vsyncpa [#allocation4], 1

</llo_original>
